<compile_context>
chip_gen: v5e
topology: v5e:2x2
jax: 0.10.0
libtpu: 0.0.40
codegen_flags: <defaults>
</compile_context>

<pallas_src>
import functools

import jax
import jax.numpy as jnp
from jax.experimental import pallas as pl
from jax.experimental.pallas import tpu as pltpu


def _round_up(x, m):
    return ((x + m - 1) // m) * m


def _lstm_classifier_kernel(x_ref, wih_ref, whh_ref, b_ref, wfc_ref, bfc_ref,
                            out_ref, gx_ref, *, unroll):
    """One grid step == one batch block; the T loop runs inside the kernel."""
    T, Bb, Dp = x_ref.shape
    Hp = whh_ref.shape[0]

    # --- Phase 1: all-timestep input projection (one big MXU matmul). -------
    # gates_x[t, b, :] = x[t, b, :] @ W_ih^T + (b_ih + b_hh); order [i|f|g|o].
    x2d = x_ref[...].reshape(T * Bb, Dp)        # leading-dim merge: layout-free
    gx = jnp.dot(x2d, wih_ref[...], preferred_element_type=jnp.float32)
    gx_ref[...] = (gx + b_ref[...]).reshape(T, Bb, 4 * Hp)   # bias folded once

    # --- Phase 2: recurrence; h/c carried as fori_loop values (vregs). ------
    mm_dtype = whh_ref.dtype

    def step(t, carry):
        h, c = carry
        gates = gx_ref[t] + jnp.dot(h.astype(mm_dtype), whh_ref[...],
                                    preferred_element_type=jnp.float32)
        i_g = jax.nn.sigmoid(gates[:, 0:Hp])
        f_g = jax.nn.sigmoid(gates[:, Hp:2 * Hp])
        g_g = jnp.tanh(gates[:, 2 * Hp:3 * Hp])
        o_g = jax.nn.sigmoid(gates[:, 3 * Hp:4 * Hp])
        c_new = f_g * c + i_g * g_g
        h_new = o_g * jnp.tanh(c_new)
        return (h_new, c_new)

    h0 = jnp.zeros((Bb, Hp), jnp.float32)
    c0 = jnp.zeros((Bb, Hp), jnp.float32)
    h_last, _ = jax.lax.fori_loop(0, T, step, (h0, c0), unroll=unroll)

    # --- Phase 3: classifier head on last hidden state (lane-dense C pad). --
    out_ref[...] = (jnp.dot(h_last.astype(wfc_ref.dtype), wfc_ref[...],
                            preferred_element_type=jnp.float32)
                    + bfc_ref[...])


def lstm_classifier_forward(x, params, *, compute_dtype=jnp.float32,
                            batch_block=None):
    """x: (B, T, D) float32 (or (B, D), unsqueezed to (B, 1, D)).

    compute_dtype: dtype of the MXU matmul operands (jnp.bfloat16 recommended
    on v6e/v7x at large shapes); accumulation / state / activations stay f32.
    """
    if x.ndim == 2:
        x = x[:, None, :]
    B, T, D = x.shape
    w_ih, w_hh, b_ih, b_hh, w_fc, b_fc = (
        params["w_ih"], params["w_hh"], params["b_ih"], params["b_hh"],
        params["w_fc"], params["b_fc"])
    H = w_hh.shape[1]
    C = w_fc.shape[0]

    # Lane/sublane-aligned padded sizes.
    Dp = _round_up(D, 128)
    Hp = _round_up(H, 128)
    Cp = _round_up(C, 128)
    itemsize = jnp.dtype(compute_dtype).itemsize

    def vmem_footprint(bb):
        return (2 * T * bb * Dp * itemsize          # x block (double-buffered)
                + (Dp + Hp) * 4 * Hp * itemsize     # W_ih^T + W_hh^T
                + Hp * Cp * itemsize                # W_fc^T
                + (4 * Hp + Cp) * 4                 # biases (f32)
                + 2 * bb * Cp * 4                   # out block (double-buffered)
                + T * bb * 4 * Hp * 4)              # gx scratch (f32)

    B_pad = _round_up(B, 8)
    if batch_block is None:
        batch_block = min(B_pad, 128)
        # (a) vreg-pressure cap: keep the h/c loop carries within ~half the
        #     256 KiB vreg file so the serial recurrence does not spill.
        while batch_block > 8 and 2 * batch_block * Hp * 4 > (128 << 10):
            batch_block //= 2
        # (b) VMEM footprint cap: leave headroom under v7x's 64 MiB physical.
        while batch_block > 8 and vmem_footprint(batch_block) > (48 << 20):
            batch_block //= 2
        batch_block = max(batch_block, 8)
    batch_block = _round_up(batch_block, 8)
    B_pad = _round_up(B_pad, batch_block)
    nb = B_pad // batch_block

    # x: (B,T,D) -> time-major, zero-padded (T, B_pad, Dp).
    x_tbd = jnp.transpose(x, (1, 0, 2)).astype(jnp.float32)
    x_pad = jnp.pad(x_tbd, ((0, 0), (0, B_pad - B), (0, Dp - D)))
    x_pad = x_pad.astype(compute_dtype)

    # Gate-aware zero padding of weights (PyTorch gate order i, f, g, o).
    w_ih4 = jnp.pad(w_ih.reshape(4, H, D), ((0, 0), (0, Hp - H), (0, Dp - D)))
    wih_t = w_ih4.reshape(4 * Hp, Dp).T.astype(compute_dtype)          # (Dp, 4Hp)
    w_hh4 = jnp.pad(w_hh.reshape(4, H, H), ((0, 0), (0, Hp - H), (0, Hp - H)))
    whh_t = w_hh4.reshape(4 * Hp, Hp).T.astype(compute_dtype)          # (Hp, 4Hp)
    bias4 = jnp.pad((b_ih + b_hh).reshape(4, H), ((0, 0), (0, Hp - H)))
    bias = bias4.reshape(1, 4 * Hp).astype(jnp.float32)                # (1, 4Hp)

    wfc_t = jnp.pad(w_fc.T, ((0, Hp - H), (0, Cp - C))).astype(compute_dtype)
    bfc = jnp.pad(b_fc, (0, Cp - C))[None, :].astype(jnp.float32)      # (1, Cp)

    # Unroll policy for the in-kernel recurrence: full unroll for short
    # sequences, otherwise a modest exact-divisor unroll (LLO visibility).
    if T <= 32:
        unroll = True
    else:
        unroll = next(u for u in (8, 4, 2, 1) if T % u == 0)

    vmem_limit = int(min(max(vmem_footprint(batch_block) + (8 << 20), 32 << 20),
                         64 << 20))

    out_pad = pl.pallas_call(
        functools.partial(_lstm_classifier_kernel, unroll=unroll),
        out_shape=jax.ShapeDtypeStruct((B_pad, Cp), jnp.float32),
        grid=(nb,),
        in_specs=[
            pl.BlockSpec((T, batch_block, Dp), lambda b: (0, b, 0)),
            pl.BlockSpec((Dp, 4 * Hp), lambda b: (0, 0)),
            pl.BlockSpec((Hp, 4 * Hp), lambda b: (0, 0)),
            pl.BlockSpec((1, 4 * Hp), lambda b: (0, 0)),
            pl.BlockSpec((Hp, Cp), lambda b: (0, 0)),
            pl.BlockSpec((1, Cp), lambda b: (0, 0)),
        ],
        out_specs=pl.BlockSpec((batch_block, Cp), lambda b: (b, 0)),
        scratch_shapes=[
            pltpu.VMEM((T, batch_block, 4 * Hp), jnp.float32),
        ],
        compiler_params=pltpu.CompilerParams(
            dimension_semantics=("parallel",),
            vmem_limit_bytes=vmem_limit),
    )(x_pad, wih_t, whh_t, bias, wfc_t, bfc)

    return out_pad[:B, :C]


def lstm_classifier_reference(x, params):
    """Pure-JAX reference matching PyTorch nn.LSTM + Linear semantics."""
    if x.ndim == 2:
        x = x[:, None, :]
    B, T, D = x.shape
    w_ih, w_hh = params["w_ih"], params["w_hh"]
    b = params["b_ih"] + params["b_hh"]
    H = w_hh.shape[1]

    def step(carry, x_t):
        h, c = carry
        gates = x_t @ w_ih.T + h @ w_hh.T + b
        i = jax.nn.sigmoid(gates[:, 0:H])
        f = jax.nn.sigmoid(gates[:, H:2 * H])
        g = jnp.tanh(gates[:, 2 * H:3 * H])
        o = jax.nn.sigmoid(gates[:, 3 * H:4 * H])
        c = f * c + i * g
        h = o * jnp.tanh(c)
        return (h, c), None

    h0 = jnp.zeros((B, H), jnp.float32)
    c0 = jnp.zeros((B, H), jnp.float32)
    (h_last, _), _ = jax.lax.scan(step, (h0, c0), jnp.transpose(x, (1, 0, 2)))
    return h_last @ params["w_fc"].T + params["b_fc"]


def make_params(key, input_dim, hidden_dim, num_classes):
    ks = jax.random.split(key, 6)
    scale = 0.1
    return {
        "w_ih": scale * jax.random.normal(ks[0], (4 * hidden_dim, input_dim), jnp.float32),
        "w_hh": scale * jax.random.normal(ks[1], (4 * hidden_dim, hidden_dim), jnp.float32),
        "b_ih": scale * jax.random.normal(ks[2], (4 * hidden_dim,), jnp.float32),
        "b_hh": scale * jax.random.normal(ks[3], (4 * hidden_dim,), jnp.float32),
        "w_fc": scale * jax.random.normal(ks[4], (num_classes, hidden_dim), jnp.float32),
        "b_fc": scale * jax.random.normal(ks[5], (num_classes,), jnp.float32),
    }


if __name__ == "__main__":
    B, T, D, H, C = 2, 8, 16, 32, 4
    key = jax.random.PRNGKey(0)
    kx, kp = jax.random.split(key)
    x = jax.random.normal(kx, (B, T, D), jnp.float32)
    params = make_params(kp, D, H, C)

    ref = lstm_classifier_reference(x, params)

    # Default f32 matmul operands: must match the reference tightly.
    out = jax.block_until_ready(lstm_classifier_forward(x, params))
    assert out.shape == (B, C)
    assert jnp.allclose(out, ref, atol=1e-4, rtol=1e-4), (out, ref)

    # bf16 MXU-operand fast path (v6e/v7x); state/activations stay f32.
    out_bf16 = jax.block_until_ready(
        lstm_classifier_forward(x, params, compute_dtype=jnp.bfloat16))
    assert out_bf16.shape == (B, C)
    assert jnp.allclose(out_bf16, ref, atol=5e-2, rtol=5e-2), (out_bf16, ref)

    # Also exercise the 2-D input path (x.dim() == 2 -> unsqueeze(1)).
    x2d = x[:, 0, :]
    out2d = jax.block_until_ready(lstm_classifier_forward(x2d, params))
    ref2d = lstm_classifier_reference(x2d, params)
    assert out2d.shape == (B, C)
    assert jnp.allclose(out2d, ref2d, atol=1e-4, rtol=1e-4), (out2d, ref2d)

    print("KERNEL_OK")
</pallas_src>

<mosaic_0001>
module attributes {stable_mosaic.version = 11 : i64} {
  func.func @_lstm_classifier_kernel(%arg0: i32, %arg1: memref<8x8x128xf32, #tpu.memory_space<vmem>>, %arg2: memref<128x512xf32, #tpu.memory_space<vmem>>, %arg3: memref<128x512xf32, #tpu.memory_space<vmem>>, %arg4: memref<1x512xf32, #tpu.memory_space<vmem>>, %arg5: memref<128x128xf32, #tpu.memory_space<vmem>>, %arg6: memref<1x128xf32, #tpu.memory_space<vmem>>, %arg7: memref<8x128xf32, #tpu.memory_space<vmem>>, %arg8: memref<8x8x512xf32, #tpu.memory_space<vmem>>) attributes {dimension_semantics = [#tpu.dimension_semantics<parallel>], iteration_bounds = array<i64: 1>, scalar_prefetch = 0 : i64, scratch_operands = 1 : i64, tpu.core_type = #tpu.core_type<tc>, window_params = [{transform_indices = @transform_0, window_bounds = array<i64: 8, 8, 128>}, {pipeline_mode = #tpu.pipeline_mode<synchronous>, transform_indices = @transform_1, window_bounds = array<i64: 128, 512>}, {pipeline_mode = #tpu.pipeline_mode<synchronous>, transform_indices = @transform_2, window_bounds = array<i64: 128, 512>}, {pipeline_mode = #tpu.pipeline_mode<synchronous>, transform_indices = @transform_3, window_bounds = array<i64: 1, 512>}, {pipeline_mode = #tpu.pipeline_mode<synchronous>, transform_indices = @transform_4, window_bounds = array<i64: 128, 128>}, {pipeline_mode = #tpu.pipeline_mode<synchronous>, transform_indices = @transform_5, window_bounds = array<i64: 1, 128>}, {transform_indices = @transform_6, window_bounds = array<i64: 8, 128>}]} {
    %c0 = arith.constant 0 : index
    %c0_0 = arith.constant 0 : index
    %c0_1 = arith.constant 0 : index
    %0 = vector.load %arg1[%c0, %c0_0, %c0_1] : memref<8x8x128xf32, #tpu.memory_space<vmem>>, vector<8x8x128xf32>
    %1 = vector.shape_cast %0 : vector<8x8x128xf32> to vector<64x128xf32>
    %c0_2 = arith.constant 0 : index
    %c0_3 = arith.constant 0 : index
    %2 = vector.load %arg2[%c0_2, %c0_3] : memref<128x512xf32, #tpu.memory_space<vmem>>, vector<128x512xf32>
    %cst = arith.constant dense<0.000000e+00> : vector<64x512xf32>
    %3 = tpu.matmul %1, %2, %cst {dimension_numbers = #tpu.dot_dimension_numbers<[1], [0], [0], [1], [0, 0, 1, 1], [], []>} : vector<64x128xf32>, vector<128x512xf32>, vector<64x512xf32> -> vector<64x512xf32>
    %c0_4 = arith.constant 0 : index
    %c0_5 = arith.constant 0 : index
    %4 = vector.load %arg4[%c0_4, %c0_5] : memref<1x512xf32, #tpu.memory_space<vmem>>, vector<1x512xf32>
    %5 = vector.broadcast %4 : vector<1x512xf32> to vector<64x512xf32>
    %6 = arith.addf %3, %5 : vector<64x512xf32>
    %7 = vector.shape_cast %6 : vector<64x512xf32> to vector<8x8x512xf32>
    %c0_6 = arith.constant 0 : index
    %c0_7 = arith.constant 0 : index
    %c0_8 = arith.constant 0 : index
    %8 = vector.load %arg8[%c0_6, %c0_7, %c0_8] : memref<8x8x512xf32, #tpu.memory_space<vmem>>, vector<8x8x512xf32>
    tpu.vector_store %arg8[%c0_6, %c0_7, %c0_8], %7 {strides = array<i32>} : memref<8x8x512xf32, #tpu.memory_space<vmem>>, vector<8x8x512xf32>,
    %cst_9 = arith.constant 0.000000e+00 : f32
    %9 = vector.broadcast %cst_9 : f32 to vector<8x128xf32>
    %cst_10 = arith.constant 0.000000e+00 : f32
    %10 = vector.broadcast %cst_10 : f32 to vector<8x128xf32>
    %c0_i32 = arith.constant 0 : i32
    %11 = arith.index_cast %c0_i32 : i32 to index
    %c0_11 = arith.constant 0 : index
    %c0_12 = arith.constant 0 : index
    %12 = vector.load %arg8[%11, %c0_11, %c0_12] : memref<8x8x512xf32, #tpu.memory_space<vmem>>, vector<1x8x512xf32>
    %13 = vector.shape_cast %12 : vector<1x8x512xf32> to vector<8x512xf32>
    %c0_13 = arith.constant 0 : index
    %c0_14 = arith.constant 0 : index
    %14 = vector.load %arg3[%c0_13, %c0_14] : memref<128x512xf32, #tpu.memory_space<vmem>>, vector<128x512xf32>
    %cst_15 = arith.constant dense<0.000000e+00> : vector<8x512xf32>
    %15 = tpu.matmul %9, %14, %cst_15 {dimension_numbers = #tpu.dot_dimension_numbers<[1], [0], [0], [1], [0, 0, 1, 1], [], []>} : vector<8x128xf32>, vector<128x512xf32>, vector<8x512xf32> -> vector<8x512xf32>
    %16 = arith.addf %13, %15 : vector<8x512xf32>
    %17 = vector.extract_strided_slice %16 {offsets = [0, 0], sizes = [8, 128], strides = [1, 1]} : vector<8x512xf32> to vector<8x128xf32>
    %18 = arith.negf %17 : vector<8x128xf32>
    %19 = math.exp %18 : vector<8x128xf32>
    %cst_16 = arith.constant 1.000000e+00 : f32
    %20 = vector.broadcast %cst_16 : f32 to vector<8x128xf32>
    %21 = arith.addf %20, %19 : vector<8x128xf32>
    %22 = arith.divf %20, %21 : vector<8x128xf32>
    %23 = vector.extract_strided_slice %16 {offsets = [0, 128], sizes = [8, 128], strides = [1, 1]} : vector<8x512xf32> to vector<8x128xf32>
    %24 = arith.negf %23 : vector<8x128xf32>
    %25 = math.exp %24 : vector<8x128xf32>
    %cst_17 = arith.constant 1.000000e+00 : f32
    %26 = vector.broadcast %cst_17 : f32 to vector<8x128xf32>
    %27 = arith.addf %26, %25 : vector<8x128xf32>
    %28 = arith.divf %26, %27 : vector<8x128xf32>
    %29 = vector.extract_strided_slice %16 {offsets = [0, 256], sizes = [8, 128], strides = [1, 1]} : vector<8x512xf32> to vector<8x128xf32>
    %30 = math.tanh %29 : vector<8x128xf32>
    %31 = vector.extract_strided_slice %16 {offsets = [0, 384], sizes = [8, 128], strides = [1, 1]} : vector<8x512xf32> to vector<8x128xf32>
    %32 = arith.negf %31 : vector<8x128xf32>
    %33 = math.exp %32 : vector<8x128xf32>
    %cst_18 = arith.constant 1.000000e+00 : f32
    %34 = vector.broadcast %cst_18 : f32 to vector<8x128xf32>
    %35 = arith.addf %34, %33 : vector<8x128xf32>
    %36 = arith.divf %34, %35 : vector<8x128xf32>
    %37 = arith.mulf %28, %10 : vector<8x128xf32>
    %38 = arith.mulf %22, %30 : vector<8x128xf32>
    %39 = arith.addf %37, %38 : vector<8x128xf32>
    %40 = math.tanh %39 : vector<8x128xf32>
    %41 = arith.mulf %36, %40 : vector<8x128xf32>
    %c1_i32 = arith.constant 1 : i32
    %42 = arith.index_cast %c1_i32 : i32 to index
    %c0_19 = arith.constant 0 : index
    %c0_20 = arith.constant 0 : index
    %43 = vector.load %arg8[%42, %c0_19, %c0_20] : memref<8x8x512xf32, #tpu.memory_space<vmem>>, vector<1x8x512xf32>
    %44 = vector.shape_cast %43 : vector<1x8x512xf32> to vector<8x512xf32>
    %c0_21 = arith.constant 0 : index
    %c0_22 = arith.constant 0 : index
    %45 = vector.load %arg3[%c0_21, %c0_22] : memref<128x512xf32, #tpu.memory_space<vmem>>, vector<128x512xf32>
    %cst_23 = arith.constant dense<0.000000e+00> : vector<8x512xf32>
    %46 = tpu.matmul %41, %45, %cst_23 {dimension_numbers = #tpu.dot_dimension_numbers<[1], [0], [0], [1], [0, 0, 1, 1], [], []>} : vector<8x128xf32>, vector<128x512xf32>, vector<8x512xf32> -> vector<8x512xf32>
    %47 = arith.addf %44, %46 : vector<8x512xf32>
    %48 = vector.extract_strided_slice %47 {offsets = [0, 0], sizes = [8, 128], strides = [1, 1]} : vector<8x512xf32> to vector<8x128xf32>
    %49 = arith.negf %48 : vector<8x128xf32>
    %50 = math.exp %49 : vector<8x128xf32>
    %cst_24 = arith.constant 1.000000e+00 : f32
    %51 = vector.broadcast %cst_24 : f32 to vector<8x128xf32>
    %52 = arith.addf %51, %50 : vector<8x128xf32>
    %53 = arith.divf %51, %52 : vector<8x128xf32>
    %54 = vector.extract_strided_slice %47 {offsets = [0, 128], sizes = [8, 128], strides = [1, 1]} : vector<8x512xf32> to vector<8x128xf32>
    %55 = arith.negf %54 : vector<8x128xf32>
    %56 = math.exp %55 : vector<8x128xf32>
    %cst_25 = arith.constant 1.000000e+00 : f32
    %57 = vector.broadcast %cst_25 : f32 to vector<8x128xf32>
    %58 = arith.addf %57, %56 : vector<8x128xf32>
    %59 = arith.divf %57, %58 : vector<8x128xf32>
    %60 = vector.extract_strided_slice %47 {offsets = [0, 256], sizes = [8, 128], strides = [1, 1]} : vector<8x512xf32> to vector<8x128xf32>
    %61 = math.tanh %60 : vector<8x128xf32>
    %62 = vector.extract_strided_slice %47 {offsets = [0, 384], sizes = [8, 128], strides = [1, 1]} : vector<8x512xf32> to vector<8x128xf32>
    %63 = arith.negf %62 : vector<8x128xf32>
    %64 = math.exp %63 : vector<8x128xf32>
    %cst_26 = arith.constant 1.000000e+00 : f32
    %65 = vector.broadcast %cst_26 : f32 to vector<8x128xf32>
    %66 = arith.addf %65, %64 : vector<8x128xf32>
    %67 = arith.divf %65, %66 : vector<8x128xf32>
    %68 = arith.mulf %59, %39 : vector<8x128xf32>
    %69 = arith.mulf %53, %61 : vector<8x128xf32>
    %70 = arith.addf %68, %69 : vector<8x128xf32>
    %71 = math.tanh %70 : vector<8x128xf32>
    %72 = arith.mulf %67, %71 : vector<8x128xf32>
    %c2_i32 = arith.constant 2 : i32
    %73 = arith.index_cast %c2_i32 : i32 to index
    %c0_27 = arith.constant 0 : index
    %c0_28 = arith.constant 0 : index
    %74 = vector.load %arg8[%73, %c0_27, %c0_28] : memref<8x8x512xf32, #tpu.memory_space<vmem>>, vector<1x8x512xf32>
    %75 = vector.shape_cast %74 : vector<1x8x512xf32> to vector<8x512xf32>
    %c0_29 = arith.constant 0 : index
    %c0_30 = arith.constant 0 : index
    %76 = vector.load %arg3[%c0_29, %c0_30] : memref<128x512xf32, #tpu.memory_space<vmem>>, vector<128x512xf32>
    %cst_31 = arith.constant dense<0.000000e+00> : vector<8x512xf32>
    %77 = tpu.matmul %72, %76, %cst_31 {dimension_numbers = #tpu.dot_dimension_numbers<[1], [0], [0], [1], [0, 0, 1, 1], [], []>} : vector<8x128xf32>, vector<128x512xf32>, vector<8x512xf32> -> vector<8x512xf32>
    %78 = arith.addf %75, %77 : vector<8x512xf32>
    %79 = vector.extract_strided_slice %78 {offsets = [0, 0], sizes = [8, 128], strides = [1, 1]} : vector<8x512xf32> to vector<8x128xf32>
    %80 = arith.negf %79 : vector<8x128xf32>
    %81 = math.exp %80 : vector<8x128xf32>
    %cst_32 = arith.constant 1.000000e+00 : f32
    %82 = vector.broadcast %cst_32 : f32 to vector<8x128xf32>
    %83 = arith.addf %82, %81 : vector<8x128xf32>
    %84 = arith.divf %82, %83 : vector<8x128xf32>
    %85 = vector.extract_strided_slice %78 {offsets = [0, 128], sizes = [8, 128], strides = [1, 1]} : vector<8x512xf32> to vector<8x128xf32>
    %86 = arith.negf %85 : vector<8x128xf32>
    %87 = math.exp %86 : vector<8x128xf32>
    %cst_33 = arith.constant 1.000000e+00 : f32
    %88 = vector.broadcast %cst_33 : f32 to vector<8x128xf32>
    %89 = arith.addf %88, %87 : vector<8x128xf32>
    %90 = arith.divf %88, %89 : vector<8x128xf32>
    %91 = vector.extract_strided_slice %78 {offsets = [0, 256], sizes = [8, 128], strides = [1, 1]} : vector<8x512xf32> to vector<8x128xf32>
    %92 = math.tanh %91 : vector<8x128xf32>
    %93 = vector.extract_strided_slice %78 {offsets = [0, 384], sizes = [8, 128], strides = [1, 1]} : vector<8x512xf32> to vector<8x128xf32>
    %94 = arith.negf %93 : vector<8x128xf32>
    %95 = math.exp %94 : vector<8x128xf32>
    %cst_34 = arith.constant 1.000000e+00 : f32
    %96 = vector.broadcast %cst_34 : f32 to vector<8x128xf32>
    %97 = arith.addf %96, %95 : vector<8x128xf32>
    %98 = arith.divf %96, %97 : vector<8x128xf32>
    %99 = arith.mulf %90, %70 : vector<8x128xf32>
    %100 = arith.mulf %84, %92 : vector<8x128xf32>
    %101 = arith.addf %99, %100 : vector<8x128xf32>
    %102 = math.tanh %101 : vector<8x128xf32>
    %103 = arith.mulf %98, %102 : vector<8x128xf32>
    %c3_i32 = arith.constant 3 : i32
    %104 = arith.index_cast %c3_i32 : i32 to index
    %c0_35 = arith.constant 0 : index
    %c0_36 = arith.constant 0 : index
    %105 = vector.load %arg8[%104, %c0_35, %c0_36] : memref<8x8x512xf32, #tpu.memory_space<vmem>>, vector<1x8x512xf32>
    %106 = vector.shape_cast %105 : vector<1x8x512xf32> to vector<8x512xf32>
    %c0_37 = arith.constant 0 : index
    %c0_38 = arith.constant 0 : index
    %107 = vector.load %arg3[%c0_37, %c0_38] : memref<128x512xf32, #tpu.memory_space<vmem>>, vector<128x512xf32>
    %cst_39 = arith.constant dense<0.000000e+00> : vector<8x512xf32>
    %108 = tpu.matmul %103, %107, %cst_39 {dimension_numbers = #tpu.dot_dimension_numbers<[1], [0], [0], [1], [0, 0, 1, 1], [], []>} : vector<8x128xf32>, vector<128x512xf32>, vector<8x512xf32> -> vector<8x512xf32>
    %109 = arith.addf %106, %108 : vector<8x512xf32>
    %110 = vector.extract_strided_slice %109 {offsets = [0, 0], sizes = [8, 128], strides = [1, 1]} : vector<8x512xf32> to vector<8x128xf32>
    %111 = arith.negf %110 : vector<8x128xf32>
    %112 = math.exp %111 : vector<8x128xf32>
    %cst_40 = arith.constant 1.000000e+00 : f32
    %113 = vector.broadcast %cst_40 : f32 to vector<8x128xf32>
    %114 = arith.addf %113, %112 : vector<8x128xf32>
    %115 = arith.divf %113, %114 : vector<8x128xf32>
    %116 = vector.extract_strided_slice %109 {offsets = [0, 128], sizes = [8, 128], strides = [1, 1]} : vector<8x512xf32> to vector<8x128xf32>
    %117 = arith.negf %116 : vector<8x128xf32>
    %118 = math.exp %117 : vector<8x128xf32>
    %cst_41 = arith.constant 1.000000e+00 : f32
    %119 = vector.broadcast %cst_41 : f32 to vector<8x128xf32>
    %120 = arith.addf %119, %118 : vector<8x128xf32>
    %121 = arith.divf %119, %120 : vector<8x128xf32>
    %122 = vector.extract_strided_slice %109 {offsets = [0, 256], sizes = [8, 128], strides = [1, 1]} : vector<8x512xf32> to vector<8x128xf32>
    %123 = math.tanh %122 : vector<8x128xf32>
    %124 = vector.extract_strided_slice %109 {offsets = [0, 384], sizes = [8, 128], strides = [1, 1]} : vector<8x512xf32> to vector<8x128xf32>
    %125 = arith.negf %124 : vector<8x128xf32>
    %126 = math.exp %125 : vector<8x128xf32>
    %cst_42 = arith.constant 1.000000e+00 : f32
    %127 = vector.broadcast %cst_42 : f32 to vector<8x128xf32>
    %128 = arith.addf %127, %126 : vector<8x128xf32>
    %129 = arith.divf %127, %128 : vector<8x128xf32>
    %130 = arith.mulf %121, %101 : vector<8x128xf32>
    %131 = arith.mulf %115, %123 : vector<8x128xf32>
    %132 = arith.addf %130, %131 : vector<8x128xf32>
    %133 = math.tanh %132 : vector<8x128xf32>
    %134 = arith.mulf %129, %133 : vector<8x128xf32>
    %c4_i32 = arith.constant 4 : i32
    %135 = arith.index_cast %c4_i32 : i32 to index
    %c0_43 = arith.constant 0 : index
    %c0_44 = arith.constant 0 : index
    %136 = vector.load %arg8[%135, %c0_43, %c0_44] : memref<8x8x512xf32, #tpu.memory_space<vmem>>, vector<1x8x512xf32>
    %137 = vector.shape_cast %136 : vector<1x8x512xf32> to vector<8x512xf32>
    %c0_45 = arith.constant 0 : index
    %c0_46 = arith.constant 0 : index
    %138 = vector.load %arg3[%c0_45, %c0_46] : memref<128x512xf32, #tpu.memory_space<vmem>>, vector<128x512xf32>
    %cst_47 = arith.constant dense<0.000000e+00> : vector<8x512xf32>
    %139 = tpu.matmul %134, %138, %cst_47 {dimension_numbers = #tpu.dot_dimension_numbers<[1], [0], [0], [1], [0, 0, 1, 1], [], []>} : vector<8x128xf32>, vector<128x512xf32>, vector<8x512xf32> -> vector<8x512xf32>
    %140 = arith.addf %137, %139 : vector<8x512xf32>
    %141 = vector.extract_strided_slice %140 {offsets = [0, 0], sizes = [8, 128], strides = [1, 1]} : vector<8x512xf32> to vector<8x128xf32>
    %142 = arith.negf %141 : vector<8x128xf32>
    %143 = math.exp %142 : vector<8x128xf32>
    %cst_48 = arith.constant 1.000000e+00 : f32
    %144 = vector.broadcast %cst_48 : f32 to vector<8x128xf32>
    %145 = arith.addf %144, %143 : vector<8x128xf32>
    %146 = arith.divf %144, %145 : vector<8x128xf32>
    %147 = vector.extract_strided_slice %140 {offsets = [0, 128], sizes = [8, 128], strides = [1, 1]} : vector<8x512xf32> to vector<8x128xf32>
    %148 = arith.negf %147 : vector<8x128xf32>
    %149 = math.exp %148 : vector<8x128xf32>
    %cst_49 = arith.constant 1.000000e+00 : f32
    %150 = vector.broadcast %cst_49 : f32 to vector<8x128xf32>
    %151 = arith.addf %150, %149 : vector<8x128xf32>
    %152 = arith.divf %150, %151 : vector<8x128xf32>
    %153 = vector.extract_strided_slice %140 {offsets = [0, 256], sizes = [8, 128], strides = [1, 1]} : vector<8x512xf32> to vector<8x128xf32>
    %154 = math.tanh %153 : vector<8x128xf32>
    %155 = vector.extract_strided_slice %140 {offsets = [0, 384], sizes = [8, 128], strides = [1, 1]} : vector<8x512xf32> to vector<8x128xf32>
    %156 = arith.negf %155 : vector<8x128xf32>
    %157 = math.exp %156 : vector<8x128xf32>
    %cst_50 = arith.constant 1.000000e+00 : f32
    %158 = vector.broadcast %cst_50 : f32 to vector<8x128xf32>
    %159 = arith.addf %158, %157 : vector<8x128xf32>
    %160 = arith.divf %158, %159 : vector<8x128xf32>
    %161 = arith.mulf %152, %132 : vector<8x128xf32>
    %162 = arith.mulf %146, %154 : vector<8x128xf32>
    %163 = arith.addf %161, %162 : vector<8x128xf32>
    %164 = math.tanh %163 : vector<8x128xf32>
    %165 = arith.mulf %160, %164 : vector<8x128xf32>
    %c5_i32 = arith.constant 5 : i32
    %166 = arith.index_cast %c5_i32 : i32 to index
    %c0_51 = arith.constant 0 : index
    %c0_52 = arith.constant 0 : index
    %167 = vector.load %arg8[%166, %c0_51, %c0_52] : memref<8x8x512xf32, #tpu.memory_space<vmem>>, vector<1x8x512xf32>
    %168 = vector.shape_cast %167 : vector<1x8x512xf32> to vector<8x512xf32>
    %c0_53 = arith.constant 0 : index
    %c0_54 = arith.constant 0 : index
    %169 = vector.load %arg3[%c0_53, %c0_54] : memref<128x512xf32, #tpu.memory_space<vmem>>, vector<128x512xf32>
    %cst_55 = arith.constant dense<0.000000e+00> : vector<8x512xf32>
    %170 = tpu.matmul %165, %169, %cst_55 {dimension_numbers = #tpu.dot_dimension_numbers<[1], [0], [0], [1], [0, 0, 1, 1], [], []>} : vector<8x128xf32>, vector<128x512xf32>, vector<8x512xf32> -> vector<8x512xf32>
    %171 = arith.addf %168, %170 : vector<8x512xf32>
    %172 = vector.extract_strided_slice %171 {offsets = [0, 0], sizes = [8, 128], strides = [1, 1]} : vector<8x512xf32> to vector<8x128xf32>
    %173 = arith.negf %172 : vector<8x128xf32>
    %174 = math.exp %173 : vector<8x128xf32>
    %cst_56 = arith.constant 1.000000e+00 : f32
    %175 = vector.broadcast %cst_56 : f32 to vector<8x128xf32>
    %176 = arith.addf %175, %174 : vector<8x128xf32>
    %177 = arith.divf %175, %176 : vector<8x128xf32>
    %178 = vector.extract_strided_slice %171 {offsets = [0, 128], sizes = [8, 128], strides = [1, 1]} : vector<8x512xf32> to vector<8x128xf32>
    %179 = arith.negf %178 : vector<8x128xf32>
    %180 = math.exp %179 : vector<8x128xf32>
    %cst_57 = arith.constant 1.000000e+00 : f32
    %181 = vector.broadcast %cst_57 : f32 to vector<8x128xf32>
    %182 = arith.addf %181, %180 : vector<8x128xf32>
    %183 = arith.divf %181, %182 : vector<8x128xf32>
    %184 = vector.extract_strided_slice %171 {offsets = [0, 256], sizes = [8, 128], strides = [1, 1]} : vector<8x512xf32> to vector<8x128xf32>
    %185 = math.tanh %184 : vector<8x128xf32>
    %186 = vector.extract_strided_slice %171 {offsets = [0, 384], sizes = [8, 128], strides = [1, 1]} : vector<8x512xf32> to vector<8x128xf32>
    %187 = arith.negf %186 : vector<8x128xf32>
    %188 = math.exp %187 : vector<8x128xf32>
    %cst_58 = arith.constant 1.000000e+00 : f32
    %189 = vector.broadcast %cst_58 : f32 to vector<8x128xf32>
    %190 = arith.addf %189, %188 : vector<8x128xf32>
    %191 = arith.divf %189, %190 : vector<8x128xf32>
    %192 = arith.mulf %183, %163 : vector<8x128xf32>
    %193 = arith.mulf %177, %185 : vector<8x128xf32>
    %194 = arith.addf %192, %193 : vector<8x128xf32>
    %195 = math.tanh %194 : vector<8x128xf32>
    %196 = arith.mulf %191, %195 : vector<8x128xf32>
    %c6_i32 = arith.constant 6 : i32
    %197 = arith.index_cast %c6_i32 : i32 to index
    %c0_59 = arith.constant 0 : index
    %c0_60 = arith.constant 0 : index
    %198 = vector.load %arg8[%197, %c0_59, %c0_60] : memref<8x8x512xf32, #tpu.memory_space<vmem>>, vector<1x8x512xf32>
    %199 = vector.shape_cast %198 : vector<1x8x512xf32> to vector<8x512xf32>
    %c0_61 = arith.constant 0 : index
    %c0_62 = arith.constant 0 : index
    %200 = vector.load %arg3[%c0_61, %c0_62] : memref<128x512xf32, #tpu.memory_space<vmem>>, vector<128x512xf32>
    %cst_63 = arith.constant dense<0.000000e+00> : vector<8x512xf32>
    %201 = tpu.matmul %196, %200, %cst_63 {dimension_numbers = #tpu.dot_dimension_numbers<[1], [0], [0], [1], [0, 0, 1, 1], [], []>} : vector<8x128xf32>, vector<128x512xf32>, vector<8x512xf32> -> vector<8x512xf32>
    %202 = arith.addf %199, %201 : vector<8x512xf32>
    %203 = vector.extract_strided_slice %202 {offsets = [0, 0], sizes = [8, 128], strides = [1, 1]} : vector<8x512xf32> to vector<8x128xf32>
    %204 = arith.negf %203 : vector<8x128xf32>
    %205 = math.exp %204 : vector<8x128xf32>
    %cst_64 = arith.constant 1.000000e+00 : f32
    %206 = vector.broadcast %cst_64 : f32 to vector<8x128xf32>
    %207 = arith.addf %206, %205 : vector<8x128xf32>
    %208 = arith.divf %206, %207 : vector<8x128xf32>
    %209 = vector.extract_strided_slice %202 {offsets = [0, 128], sizes = [8, 128], strides = [1, 1]} : vector<8x512xf32> to vector<8x128xf32>
    %210 = arith.negf %209 : vector<8x128xf32>
    %211 = math.exp %210 : vector<8x128xf32>
    %cst_65 = arith.constant 1.000000e+00 : f32
    %212 = vector.broadcast %cst_65 : f32 to vector<8x128xf32>
    %213 = arith.addf %212, %211 : vector<8x128xf32>
    %214 = arith.divf %212, %213 : vector<8x128xf32>
    %215 = vector.extract_strided_slice %202 {offsets = [0, 256], sizes = [8, 128], strides = [1, 1]} : vector<8x512xf32> to vector<8x128xf32>
    %216 = math.tanh %215 : vector<8x128xf32>
    %217 = vector.extract_strided_slice %202 {offsets = [0, 384], sizes = [8, 128], strides = [1, 1]} : vector<8x512xf32> to vector<8x128xf32>
    %218 = arith.negf %217 : vector<8x128xf32>
    %219 = math.exp %218 : vector<8x128xf32>
    %cst_66 = arith.constant 1.000000e+00 : f32
    %220 = vector.broadcast %cst_66 : f32 to vector<8x128xf32>
    %221 = arith.addf %220, %219 : vector<8x128xf32>
    %222 = arith.divf %220, %221 : vector<8x128xf32>
    %223 = arith.mulf %214, %194 : vector<8x128xf32>
    %224 = arith.mulf %208, %216 : vector<8x128xf32>
    %225 = arith.addf %223, %224 : vector<8x128xf32>
    %226 = math.tanh %225 : vector<8x128xf32>
    %227 = arith.mulf %222, %226 : vector<8x128xf32>
    %c7_i32 = arith.constant 7 : i32
    %228 = arith.index_cast %c7_i32 : i32 to index
    %c0_67 = arith.constant 0 : index
    %c0_68 = arith.constant 0 : index
    %229 = vector.load %arg8[%228, %c0_67, %c0_68] : memref<8x8x512xf32, #tpu.memory_space<vmem>>, vector<1x8x512xf32>
    %230 = vector.shape_cast %229 : vector<1x8x512xf32> to vector<8x512xf32>
    %c0_69 = arith.constant 0 : index
    %c0_70 = arith.constant 0 : index
    %231 = vector.load %arg3[%c0_69, %c0_70] : memref<128x512xf32, #tpu.memory_space<vmem>>, vector<128x512xf32>
    %cst_71 = arith.constant dense<0.000000e+00> : vector<8x512xf32>
    %232 = tpu.matmul %227, %231, %cst_71 {dimension_numbers = #tpu.dot_dimension_numbers<[1], [0], [0], [1], [0, 0, 1, 1], [], []>} : vector<8x128xf32>, vector<128x512xf32>, vector<8x512xf32> -> vector<8x512xf32>
    %233 = arith.addf %230, %232 : vector<8x512xf32>
    %234 = vector.extract_strided_slice %233 {offsets = [0, 0], sizes = [8, 128], strides = [1, 1]} : vector<8x512xf32> to vector<8x128xf32>
    %235 = arith.negf %234 : vector<8x128xf32>
    %236 = math.exp %235 : vector<8x128xf32>
    %cst_72 = arith.constant 1.000000e+00 : f32
    %237 = vector.broadcast %cst_72 : f32 to vector<8x128xf32>
    %238 = arith.addf %237, %236 : vector<8x128xf32>
    %239 = arith.divf %237, %238 : vector<8x128xf32>
    %240 = vector.extract_strided_slice %233 {offsets = [0, 128], sizes = [8, 128], strides = [1, 1]} : vector<8x512xf32> to vector<8x128xf32>
    %241 = arith.negf %240 : vector<8x128xf32>
    %242 = math.exp %241 : vector<8x128xf32>
    %cst_73 = arith.constant 1.000000e+00 : f32
    %243 = vector.broadcast %cst_73 : f32 to vector<8x128xf32>
    %244 = arith.addf %243, %242 : vector<8x128xf32>
    %245 = arith.divf %243, %244 : vector<8x128xf32>
    %246 = vector.extract_strided_slice %233 {offsets = [0, 256], sizes = [8, 128], strides = [1, 1]} : vector<8x512xf32> to vector<8x128xf32>
    %247 = math.tanh %246 : vector<8x128xf32>
    %248 = vector.extract_strided_slice %233 {offsets = [0, 384], sizes = [8, 128], strides = [1, 1]} : vector<8x512xf32> to vector<8x128xf32>
    %249 = arith.negf %248 : vector<8x128xf32>
    %250 = math.exp %249 : vector<8x128xf32>
    %cst_74 = arith.constant 1.000000e+00 : f32
    %251 = vector.broadcast %cst_74 : f32 to vector<8x128xf32>
    %252 = arith.addf %251, %250 : vector<8x128xf32>
    %253 = arith.divf %251, %252 : vector<8x128xf32>
    %254 = arith.mulf %245, %225 : vector<8x128xf32>
    %255 = arith.mulf %239, %247 : vector<8x128xf32>
    %256 = arith.addf %254, %255 : vector<8x128xf32>
    %257 = math.tanh %256 : vector<8x128xf32>
    %258 = arith.mulf %253, %257 : vector<8x128xf32>
    %c8_i32 = arith.constant 8 : i32
    %c0_75 = arith.constant 0 : index
    %c0_76 = arith.constant 0 : index
    %259 = vector.load %arg5[%c0_75, %c0_76] : memref<128x128xf32, #tpu.memory_space<vmem>>, vector<128x128xf32>
    %cst_77 = arith.constant dense<0.000000e+00> : vector<8x128xf32>
    %260 = tpu.matmul %258, %259, %cst_77 {dimension_numbers = #tpu.dot_dimension_numbers<[1], [0], [0], [1], [0, 0, 1, 1], [], []>} : vector<8x128xf32>, vector<128x128xf32>, vector<8x128xf32> -> vector<8x128xf32>
    %c0_78 = arith.constant 0 : index
    %c0_79 = arith.constant 0 : index
    %261 = vector.load %arg6[%c0_78, %c0_79] : memref<1x128xf32, #tpu.memory_space<vmem>>, vector<1x128xf32>
    %262 = vector.broadcast %261 : vector<1x128xf32> to vector<8x128xf32>
    %263 = arith.addf %260, %262 : vector<8x128xf32>
    %c0_80 = arith.constant 0 : index
    %c0_81 = arith.constant 0 : index
    %264 = vector.load %arg7[%c0_80, %c0_81] : memref<8x128xf32, #tpu.memory_space<vmem>>, vector<8x128xf32>
    tpu.vector_store %arg7[%c0_80, %c0_81], %263 {strides = array<i32>} : memref<8x128xf32, #tpu.memory_space<vmem>>, vector<8x128xf32>,
    return
  }
  func.func @transform_0(%arg0: i32) -> (i32, i32, i32) {
    %c0_i32 = arith.constant 0 : i32
    %c0_i32_0 = arith.constant 0 : i32
    %c0_i32_1 = arith.constant 0 : i32
    return %c0_i32, %arg0, %c0_i32_0 : i32, i32, i32
  }
  func.func @transform_1(%arg0: i32) -> (i32, i32) {
    %c0_i32 = arith.constant 0 : i32
    %c0_i32_0 = arith.constant 0 : i32
    %c0_i32_1 = arith.constant 0 : i32
    return %c0_i32, %c0_i32_0 : i32, i32
  }
  func.func @transform_2(%arg0: i32) -> (i32, i32) {
    %c0_i32 = arith.constant 0 : i32
    %c0_i32_0 = arith.constant 0 : i32
    %c0_i32_1 = arith.constant 0 : i32
    return %c0_i32, %c0_i32_0 : i32, i32
  }
  func.func @transform_3(%arg0: i32) -> (i32, i32) {
    %c0_i32 = arith.constant 0 : i32
    %c0_i32_0 = arith.constant 0 : i32
    %c0_i32_1 = arith.constant 0 : i32
    return %c0_i32, %c0_i32_0 : i32, i32
  }
  func.func @transform_4(%arg0: i32) -> (i32, i32) {
    %c0_i32 = arith.constant 0 : i32
    %c0_i32_0 = arith.constant 0 : i32
    %c0_i32_1 = arith.constant 0 : i32
    return %c0_i32, %c0_i32_0 : i32, i32
  }
  func.func @transform_5(%arg0: i32) -> (i32, i32) {
    %c0_i32 = arith.constant 0 : i32
    %c0_i32_0 = arith.constant 0 : i32
    %c0_i32_1 = arith.constant 0 : i32
    return %c0_i32, %c0_i32_0 : i32, i32
  }
  func.func @transform_6(%arg0: i32) -> (i32, i32) {
    %c0_i32 = arith.constant 0 : i32
    %c0_i32_0 = arith.constant 0 : i32
    return %arg0, %c0_i32 : i32, i32
  }
}

</mosaic_0001>

<llo_original>
// kernel: tpu_custom_call.1
$region0: #{tpu_custom_call.1}
  #allocation0 [shape = 'u32[]', space=smem, size = 0x4, offset = 0x4, fixed_abs, tag = 'smem constant byte address 0x4 - core index']
  #allocation1 [shape = 'u32[72,128]{1,0:T(1,128)}', space=vmem, size = 0x9000, scoped, tag = 'internal scratch']
  #allocation2 [shape = 'f32[8,8,512]{2,1,0:T(8,128)}', space=vmem, size = 0x20000, scoped, tag = 'scratch operand']
  %s0 = inlined_call_operand.hbm [shape: f32[8,8,128], index: 0, kind: input, shape index: {}]
  %s1 = inlined_call_operand.hbm [shape: f32[128,512], index: 1, kind: input, shape index: {}]
  %s2 = inlined_call_operand.hbm [shape: f32[128,512], index: 2, kind: input, shape index: {}]
  %s3 = inlined_call_operand.hbm [shape: f32[1,512], index: 3, kind: input, shape index: {}]
  %s4 = inlined_call_operand.hbm [shape: f32[128,128], index: 4, kind: input, shape index: {}]
  %s5 = inlined_call_operand.vmem [shape: f32[1,128], index: 5, kind: input, shape index: {}]
  %s6 = inlined_call_operand.hbm [shape: f32[8,128], index: 6, kind: output, shape index: {}]
  %s7 = sld [smem:[#allocation0]]
  $region54: #{tpu_custom_call.1} parent=0
    _
  %s9 = ssub.s32 1, %s7
  %s10 = scalar_select 0, %s9, %s7
  $region1: #{tpu_custom_call.1} parent=0
    #allocation3 [shape = 'u8[32768]{0}', space=vmem, size = 0x8000, scoped, tag = 'input window, operand 0, single buffered']
    #allocation4 [shape = 's32[1]{0}', space=sflag, size = 0x4, scoped, tag = 'scoped memory for tpu_custom_call.1']
    #allocation5 [shape = 's32[1]{0}', space=sflag, size = 0x4, scoped, tag = 'scoped memory for tpu_custom_call.1']
    #allocation6 [shape = 'u8[262144]{0}', space=vmem, size = 0x40000, scoped, tag = 'input window, operand 1, single buffered']
    #allocation7 [shape = 's32[1]{0}', space=sflag, size = 0x4, scoped, tag = 'scoped memory for tpu_custom_call.1']
    #allocation8 [shape = 'u8[262144]{0}', space=vmem, size = 0x40000, scoped, tag = 'input window, operand 2, single buffered']
    #allocation9 [shape = 'u8[2048]{0}', space=vmem, size = 0x800, scoped, tag = 'input window, operand 3, single buffered']
    #allocation10 [shape = 's32[1]{0}', space=sflag, size = 0x4, scoped, tag = 'scoped memory for tpu_custom_call.1']
    #allocation11 [shape = 'u8[65536]{0}', space=vmem, size = 0x10000, scoped, tag = 'input window, operand 4, single buffered']
    #allocation12 [shape = 'u8[4096]{0}', space=vmem, size = 0x1000, scoped, tag = 'output window, operand 0, single buffered']
    %11 = vsyncpa [#allocation4], 0
    %12 = vsyncpa [#allocation7], 0
    %13 = vsyncpa [#allocation10], 0
    %14 = vsyncpa [#allocation5], 0
    // Predicated region
    $region2: #{tpu_custom_call.1} parent=1 // pred_check
      _
    $region3: #{tpu_custom_call.1} parent=1 // pred_check_branch
      %16 = sbr.rel (0) target = $region5
    $region4: #{tpu_custom_call.1} parent=1 // pred_region
      %18 = vsyncadd [#allocation4], 0
      %s19 = sshll.u32 %s0, 4
      %s20 = int_to_ptr.hbm [resolvable:$true] %s19
      %s21 = sshll.u32 [#allocation3], 4
      %s22 = int_to_ptr.vmem [resolvable:$true] %s21
      %27 = dma.hbm_to_vmem [thread:$0]  %s20, 1024, %s22, [#allocation4], 128, 128, 8
    $region5: #{tpu_custom_call.1} parent=1 // pred_fallthru
      _
    // Predicated region
    $region6: #{tpu_custom_call.1} parent=1 // pred_check
      _
    $region7: #{tpu_custom_call.1} parent=1 // pred_check_branch
      %29 = sbr.rel (0) target = $region9
    $region8: #{tpu_custom_call.1} parent=1 // pred_region
      %31 = vsyncadd [#allocation7], 0
      %s32 = sshll.u32 %s1, 4
      %s33 = int_to_ptr.hbm [resolvable:$true] %s32
      %s34 = sshll.u32 [#allocation6], 4
      %s35 = int_to_ptr.vmem [resolvable:$true] %s34
      %40 = dma.hbm_to_vmem [thread:$0]  %s33, 8192, %s35, [#allocation7], 512, 512, 32
    $region9: #{tpu_custom_call.1} parent=1 // pred_fallthru
      _
    // Predicated region
    $region10: #{tpu_custom_call.1} parent=1 // pred_check
      _
    $region11: #{tpu_custom_call.1} parent=1 // pred_check_branch
      %42 = sbr.rel (0) target = $region13
    $region12: #{tpu_custom_call.1} parent=1 // pred_region
      %44 = vsyncadd [#allocation7], 0
      %s45 = sshll.u32 %s2, 4
      %s46 = int_to_ptr.hbm [resolvable:$true] %s45
      %s47 = sshll.u32 [#allocation8], 4
      %s48 = int_to_ptr.vmem [resolvable:$true] %s47
      %53 = dma.hbm_to_vmem [thread:$0]  %s46, 8192, %s48, [#allocation7], 512, 512, 32
    $region13: #{tpu_custom_call.1} parent=1 // pred_fallthru
      _
    // Predicated region
    $region14: #{tpu_custom_call.1} parent=1 // pred_check
      _
    $region15: #{tpu_custom_call.1} parent=1 // pred_check_branch
      %55 = sbr.rel (0) target = $region17
    $region16: #{tpu_custom_call.1} parent=1 // pred_region
      %57 = vsyncadd [#allocation10], 0
      %s59 = sshll.u32 %s3, 4
      %s60 = int_to_ptr.hbm [resolvable:$true] %s59
      %s61 = sshll.u32 [#allocation9], 4
      %s62 = int_to_ptr.vmem [resolvable:$true] %s61
      %64 = dma.hbm_to_vmem [thread:$0]  %s60, 64, %s62, [#allocation10]
    $region17: #{tpu_custom_call.1} parent=1 // pred_fallthru
      _
    // Predicated region
    $region18: #{tpu_custom_call.1} parent=1 // pred_check
      _
    $region19: #{tpu_custom_call.1} parent=1 // pred_check_branch
      %66 = sbr.rel (0) target = $region21
    $region20: #{tpu_custom_call.1} parent=1 // pred_region
      %68 = vsyncadd [#allocation10], 0
      %s69 = sshll.u32 %s4, 4
      %s70 = int_to_ptr.hbm [resolvable:$true] %s69
      %s71 = sshll.u32 [#allocation11], 4
      %s72 = int_to_ptr.vmem [resolvable:$true] %s71
      %77 = dma.hbm_to_vmem [thread:$0]  %s70, 2048, %s72, [#allocation10], 128, 128, 8
    $region21: #{tpu_custom_call.1} parent=1 // pred_fallthru
      _
    // Predicated region
    $region22: #{tpu_custom_call.1} parent=1 // pred_check
      _
    $region23: #{tpu_custom_call.1} parent=1 // pred_check_branch
      %79 = sbr.rel (0) target = $region25
    $region24: #{tpu_custom_call.1} parent=1 // pred_region
      _
    $region25: #{tpu_custom_call.1} parent=1 // pred_fallthru
      _
    // Predicated region
    $region26: #{tpu_custom_call.1} parent=1 // pred_check
      _
    $region27: #{tpu_custom_call.1} parent=1 // pred_check_branch
      %81 = sbr.rel (0) target = $region29
    $region28: #{tpu_custom_call.1} parent=1 // pred_region
      %83 = dma.done [#allocation4], 1024
    $region29: #{tpu_custom_call.1} parent=1 // pred_fallthru
      _
    // Predicated region
    $region30: #{tpu_custom_call.1} parent=1 // pred_check
      _
    $region31: #{tpu_custom_call.1} parent=1 // pred_check_branch
      %85 = sbr.rel (0) target = $region33
    $region32: #{tpu_custom_call.1} parent=1 // pred_region
      %87 = dma.done [#allocation7], 8192
    $region33: #{tpu_custom_call.1} parent=1 // pred_fallthru
      _
    // Predicated region
    $region34: #{tpu_custom_call.1} parent=1 // pred_check
      _
    $region35: #{tpu_custom_call.1} parent=1 // pred_check_branch
      %89 = sbr.rel (0) target = $region37
    $region36: #{tpu_custom_call.1} parent=1 // pred_region
      %91 = dma.done [#allocation7], 8192
    $region37: #{tpu_custom_call.1} parent=1 // pred_fallthru
      _
    // Predicated region
    $region38: #{tpu_custom_call.1} parent=1 // pred_check
      _
    $region39: #{tpu_custom_call.1} parent=1 // pred_check_branch
      %93 = sbr.rel (0) target = $region41
    $region40: #{tpu_custom_call.1} parent=1 // pred_region
      %95 = dma.done [#allocation10], 64
    $region41: #{tpu_custom_call.1} parent=1 // pred_fallthru
      _
    // Predicated region
    $region42: #{tpu_custom_call.1} parent=1 // pred_check
      _
    $region43: #{tpu_custom_call.1} parent=1 // pred_check_branch
      %97 = sbr.rel (0) target = $region45
    $region44: #{tpu_custom_call.1} parent=1 // pred_region
      %99 = dma.done [#allocation10], 2048
    $region45: #{tpu_custom_call.1} parent=1 // pred_fallthru
      _
    %v100 = vld [vmem:[#allocation3] sm:$0xff]
    %v101 = vld [vmem:[#allocation3 + $0x8] sm:$0xff]
    %v102 = vld [vmem:[#allocation3 + $0x10] sm:$0xff]
    %v103 = vld [vmem:[#allocation3 + $0x18] sm:$0xff]
    %v104 = vld [vmem:[#allocation3 + $0x20] sm:$0xff]
    %v105 = vld [vmem:[#allocation3 + $0x28] sm:$0xff]
    %v106 = vld [vmem:[#allocation3 + $0x30] sm:$0xff]
    %v107 = vld [vmem:[#allocation3 + $0x38] sm:$0xff]
    %v108 = vld [vmem:[#allocation6] sm:$0xff]
    %v109 = vld [vmem:[#allocation6 + $0x8] sm:$0xff]
    %v110 = vld [vmem:[#allocation6 + $0x10] sm:$0xff]
    %v111 = vld [vmem:[#allocation6 + $0x18] sm:$0xff]
    %v112 = vld [vmem:[#allocation6 + $0x20] sm:$0xff]
    %v113 = vld [vmem:[#allocation6 + $0x28] sm:$0xff]
    %v114 = vld [vmem:[#allocation6 + $0x30] sm:$0xff]
    %v115 = vld [vmem:[#allocation6 + $0x38] sm:$0xff]
    %v116 = vld [vmem:[#allocation6 + $0x40] sm:$0xff]
    %v117 = vld [vmem:[#allocation6 + $0x48] sm:$0xff]
    %v118 = vld [vmem:[#allocation6 + $0x50] sm:$0xff]
    %v119 = vld [vmem:[#allocation6 + $0x58] sm:$0xff]
    %v120 = vld [vmem:[#allocation6 + $0x60] sm:$0xff]
    %v121 = vld [vmem:[#allocation6 + $0x68] sm:$0xff]
    %v122 = vld [vmem:[#allocation6 + $0x70] sm:$0xff]
    %v123 = vld [vmem:[#allocation6 + $0x78] sm:$0xff]
    %v124 = vld [vmem:[#allocation6 + $0x80] sm:$0xff]
    %v125 = vld [vmem:[#allocation6 + $0x88] sm:$0xff]
    %v126 = vld [vmem:[#allocation6 + $0x90] sm:$0xff]
    %v127 = vld [vmem:[#allocation6 + $0x98] sm:$0xff]
    %v128 = vld [vmem:[#allocation6 + $0xa0] sm:$0xff]
    %v129 = vld [vmem:[#allocation6 + $0xa8] sm:$0xff]
    %v130 = vld [vmem:[#allocation6 + $0xb0] sm:$0xff]
    %v131 = vld [vmem:[#allocation6 + $0xb8] sm:$0xff]
    %v132 = vld [vmem:[#allocation6 + $0xc0] sm:$0xff]
    %v133 = vld [vmem:[#allocation6 + $0xc8] sm:$0xff]
    %v134 = vld [vmem:[#allocation6 + $0xd0] sm:$0xff]
    %v135 = vld [vmem:[#allocation6 + $0xd8] sm:$0xff]
    %v136 = vld [vmem:[#allocation6 + $0xe0] sm:$0xff]
    %v137 = vld [vmem:[#allocation6 + $0xe8] sm:$0xff]
    %v138 = vld [vmem:[#allocation6 + $0xf0] sm:$0xff]
    %v139 = vld [vmem:[#allocation6 + $0xf8] sm:$0xff]
    %v140 = vld [vmem:[#allocation6 + $0x100] sm:$0xff]
    %v141 = vld [vmem:[#allocation6 + $0x108] sm:$0xff]
    %v142 = vld [vmem:[#allocation6 + $0x110] sm:$0xff]
    %v143 = vld [vmem:[#allocation6 + $0x118] sm:$0xff]
    %v144 = vld [vmem:[#allocation6 + $0x120] sm:$0xff]
    %v145 = vld [vmem:[#allocation6 + $0x128] sm:$0xff]
    %v146 = vld [vmem:[#allocation6 + $0x130] sm:$0xff]
    %v147 = vld [vmem:[#allocation6 + $0x138] sm:$0xff]
    %v148 = vld [vmem:[#allocation6 + $0x140] sm:$0xff]
    %v149 = vld [vmem:[#allocation6 + $0x148] sm:$0xff]
    %v150 = vld [vmem:[#allocation6 + $0x150] sm:$0xff]
    %v151 = vld [vmem:[#allocation6 + $0x158] sm:$0xff]
    %v152 = vld [vmem:[#allocation6 + $0x160] sm:$0xff]
    %v153 = vld [vmem:[#allocation6 + $0x168] sm:$0xff]
    %v154 = vld [vmem:[#allocation6 + $0x170] sm:$0xff]
    %v155 = vld [vmem:[#allocation6 + $0x178] sm:$0xff]
    %v156 = vld [vmem:[#allocation6 + $0x180] sm:$0xff]
    %v157 = vld [vmem:[#allocation6 + $0x188] sm:$0xff]
    %v158 = vld [vmem:[#allocation6 + $0x190] sm:$0xff]
    %v159 = vld [vmem:[#allocation6 + $0x198] sm:$0xff]
    %v160 = vld [vmem:[#allocation6 + $0x1a0] sm:$0xff]
    %v161 = vld [vmem:[#allocation6 + $0x1a8] sm:$0xff]
    %v162 = vld [vmem:[#allocation6 + $0x1b0] sm:$0xff]
    %v163 = vld [vmem:[#allocation6 + $0x1b8] sm:$0xff]
    %v164 = vld [vmem:[#allocation6 + $0x1c0] sm:$0xff]
    %v165 = vld [vmem:[#allocation6 + $0x1c8] sm:$0xff]
    %v166 = vld [vmem:[#allocation6 + $0x1d0] sm:$0xff]
    %v167 = vld [vmem:[#allocation6 + $0x1d8] sm:$0xff]
    %v168 = vld [vmem:[#allocation6 + $0x1e0] sm:$0xff]
    %v169 = vld [vmem:[#allocation6 + $0x1e8] sm:$0xff]
    %v170 = vld [vmem:[#allocation6 + $0x1f0] sm:$0xff]
    %v171 = vld [vmem:[#allocation6 + $0x1f8] sm:$0xff]
    %v172 = vld [vmem:[#allocation9] sm:$0xf]
    %v174 = vperm.slane %v172, 0
    %v175 = vperm.slane %v172, 1
    %v176 = vperm.slane %v172, 2
    %v177 = vperm.slane %v172, 3
    %182 = vmatpush.msra.mxu0 %v168
    %183 = vmatpush.msra.mxu0 %v164
    %184 = vmatpush.msra.mxu0 %v160
    %185 = vmatpush.msra.mxu0 %v156
    %186 = vmatpush.msra.mxu0 %v152
    %187 = vmatpush.msra.mxu0 %v148
    %188 = vmatpush.msra.mxu0 %v144
    %189 = vmatpush.msra.mxu0 %v140
    %190 = vmatpush.msra.mxu0 %v136
    %191 = vmatpush.msra.mxu0 %v132
    %192 = vmatpush.msra.mxu0 %v128
    %193 = vmatpush.msra.mxu0 %v124
    %194 = vmatpush.msra.mxu0 %v120
    %195 = vmatpush.msra.mxu0 %v116
    %196 = vmatpush.msra.mxu0 %v112
    %197 = vmatpush.msra.mxu0 %v108
    %198 = vmatmul.f32.gmra.mxu0 %v100
    %v199 = vpop.f32.mrf.mxu0
    %v200 = vadd.f32 %v174, %v199
    %201 = vmatmul.f32.gmra.mxu0 %v101
    %v202 = vpop.f32.mrf.mxu0
    %v203 = vadd.f32 %v174, %v202
    %204 = vmatmul.f32.gmra.mxu0 %v102
    %v205 = vpop.f32.mrf.mxu0
    %v206 = vadd.f32 %v174, %v205
    %207 = vmatmul.f32.gmra.mxu0 %v103
    %v208 = vpop.f32.mrf.mxu0
    %v209 = vadd.f32 %v174, %v208
    %210 = vmatmul.f32.gmra.mxu0 %v104
    %v211 = vpop.f32.mrf.mxu0
    %v212 = vadd.f32 %v174, %v211
    %213 = vmatmul.f32.gmra.mxu0 %v105
    %v214 = vpop.f32.mrf.mxu0
    %v215 = vadd.f32 %v174, %v214
    %216 = vmatmul.f32.gmra.mxu0 %v106
    %v217 = vpop.f32.mrf.mxu0
    %v218 = vadd.f32 %v174, %v217
    %219 = vmatmul.f32.gmra.mxu0 %v107
    %v220 = vpop.f32.mrf.mxu0
    %v221 = vadd.f32 %v174, %v220
    %222 = vdwg.mxu0
    %223 = vmatpush.msra.mxu0 %v169
    %224 = vmatpush.msra.mxu0 %v165
    %225 = vmatpush.msra.mxu0 %v161
    %226 = vmatpush.msra.mxu0 %v157
    %227 = vmatpush.msra.mxu0 %v153
    %228 = vmatpush.msra.mxu0 %v149
    %229 = vmatpush.msra.mxu0 %v145
    %230 = vmatpush.msra.mxu0 %v141
    %231 = vmatpush.msra.mxu0 %v137
    %232 = vmatpush.msra.mxu0 %v133
    %233 = vmatpush.msra.mxu0 %v129
    %234 = vmatpush.msra.mxu0 %v125
    %235 = vmatpush.msra.mxu0 %v121
    %236 = vmatpush.msra.mxu0 %v117
    %237 = vmatpush.msra.mxu0 %v113
    %238 = vmatpush.msra.mxu0 %v109
    %239 = vmatmul.f32.gmra.mxu0 %v100
    %v240 = vpop.f32.mrf.mxu0
    %v241 = vadd.f32 %v175, %v240
    %242 = vmatmul.f32.gmra.mxu0 %v101
    %v243 = vpop.f32.mrf.mxu0
    %v244 = vadd.f32 %v175, %v243
    %245 = vmatmul.f32.gmra.mxu0 %v102
    %v246 = vpop.f32.mrf.mxu0
    %v247 = vadd.f32 %v175, %v246
    %248 = vmatmul.f32.gmra.mxu0 %v103
    %v249 = vpop.f32.mrf.mxu0
    %v250 = vadd.f32 %v175, %v249
    %251 = vmatmul.f32.gmra.mxu0 %v104
    %v252 = vpop.f32.mrf.mxu0
    %v253 = vadd.f32 %v175, %v252
    %254 = vmatmul.f32.gmra.mxu0 %v105
    %v255 = vpop.f32.mrf.mxu0
    %v256 = vadd.f32 %v175, %v255
    %257 = vmatmul.f32.gmra.mxu0 %v106
    %v258 = vpop.f32.mrf.mxu0
    %v259 = vadd.f32 %v175, %v258
    %260 = vmatmul.f32.gmra.mxu0 %v107
    %v261 = vpop.f32.mrf.mxu0
    %v262 = vadd.f32 %v175, %v261
    %263 = vdwg.mxu0
    %264 = vmatpush.msra.mxu0 %v170
    %265 = vmatpush.msra.mxu0 %v166
    %266 = vmatpush.msra.mxu0 %v162
    %267 = vmatpush.msra.mxu0 %v158
    %268 = vmatpush.msra.mxu0 %v154
    %269 = vmatpush.msra.mxu0 %v150
    %270 = vmatpush.msra.mxu0 %v146
    %271 = vmatpush.msra.mxu0 %v142
    %272 = vmatpush.msra.mxu0 %v138
    %273 = vmatpush.msra.mxu0 %v134
    %274 = vmatpush.msra.mxu0 %v130
    %275 = vmatpush.msra.mxu0 %v126
    %276 = vmatpush.msra.mxu0 %v122
    %277 = vmatpush.msra.mxu0 %v118
    %278 = vmatpush.msra.mxu0 %v114
    %279 = vmatpush.msra.mxu0 %v110
    %280 = vmatmul.f32.gmra.mxu0 %v100
    %v281 = vpop.f32.mrf.mxu0
    %v282 = vadd.f32 %v176, %v281
    %283 = vmatmul.f32.gmra.mxu0 %v101
    %v284 = vpop.f32.mrf.mxu0
    %v285 = vadd.f32 %v176, %v284
    %286 = vmatmul.f32.gmra.mxu0 %v102
    %v287 = vpop.f32.mrf.mxu0
    %v288 = vadd.f32 %v176, %v287
    %289 = vmatmul.f32.gmra.mxu0 %v103
    %v290 = vpop.f32.mrf.mxu0
    %v291 = vadd.f32 %v176, %v290
    %292 = vmatmul.f32.gmra.mxu0 %v104
    %v293 = vpop.f32.mrf.mxu0
    %v294 = vadd.f32 %v176, %v293
    %295 = vmatmul.f32.gmra.mxu0 %v105
    %v296 = vpop.f32.mrf.mxu0
    %v297 = vadd.f32 %v176, %v296
    %298 = vmatmul.f32.gmra.mxu0 %v106
    %v299 = vpop.f32.mrf.mxu0
    %v300 = vadd.f32 %v176, %v299
    %301 = vmatmul.f32.gmra.mxu0 %v107
    %v302 = vpop.f32.mrf.mxu0
    %v303 = vadd.f32 %v176, %v302
    %304 = vdwg.mxu0
    %305 = vmatpush.msra.mxu0 %v171
    %306 = vmatpush.msra.mxu0 %v167
    %307 = vmatpush.msra.mxu0 %v163
    %308 = vmatpush.msra.mxu0 %v159
    %309 = vmatpush.msra.mxu0 %v155
    %310 = vmatpush.msra.mxu0 %v151
    %311 = vmatpush.msra.mxu0 %v147
    %312 = vmatpush.msra.mxu0 %v143
    %313 = vmatpush.msra.mxu0 %v139
    %314 = vmatpush.msra.mxu0 %v135
    %315 = vmatpush.msra.mxu0 %v131
    %316 = vmatpush.msra.mxu0 %v127
    %317 = vmatpush.msra.mxu0 %v123
    %318 = vmatpush.msra.mxu0 %v119
    %319 = vmatpush.msra.mxu0 %v115
    %320 = vmatpush.msra.mxu0 %v111
    %321 = vmatmul.f32.gmra.mxu0 %v100
    %v322 = vpop.f32.mrf.mxu0
    %v323 = vadd.f32 %v177, %v322
    %324 = vmatmul.f32.gmra.mxu0 %v101
    %v325 = vpop.f32.mrf.mxu0
    %v326 = vadd.f32 %v177, %v325
    %327 = vmatmul.f32.gmra.mxu0 %v102
    %v328 = vpop.f32.mrf.mxu0
    %v329 = vadd.f32 %v177, %v328
    %330 = vmatmul.f32.gmra.mxu0 %v103
    %v331 = vpop.f32.mrf.mxu0
    %v332 = vadd.f32 %v177, %v331
    %333 = vmatmul.f32.gmra.mxu0 %v104
    %v334 = vpop.f32.mrf.mxu0
    %v335 = vadd.f32 %v177, %v334
    %336 = vmatmul.f32.gmra.mxu0 %v105
    %v337 = vpop.f32.mrf.mxu0
    %v338 = vadd.f32 %v177, %v337
    %339 = vmatmul.f32.gmra.mxu0 %v106
    %v340 = vpop.f32.mrf.mxu0
    %v341 = vadd.f32 %v177, %v340
    %342 = vmatmul.f32.gmra.mxu0 %v107
    %v343 = vpop.f32.mrf.mxu0
    %v344 = vadd.f32 %v177, %v343
    %345 = vdwg.mxu0
    %346 = vst [vmem:[#allocation2] sm:$0xff] %v200
    %347 = vst [vmem:[#allocation2 + $0x8] sm:$0xff] %v241
    %348 = vst [vmem:[#allocation2 + $0x10] sm:$0xff] %v282
    %349 = vst [vmem:[#allocation2 + $0x18] sm:$0xff] %v323
    %350 = vst [vmem:[#allocation2 + $0x20] sm:$0xff] %v203
    %351 = vst [vmem:[#allocation2 + $0x28] sm:$0xff] %v244
    %352 = vst [vmem:[#allocation2 + $0x30] sm:$0xff] %v285
    %353 = vst [vmem:[#allocation2 + $0x38] sm:$0xff] %v326
    %354 = vst [vmem:[#allocation2 + $0x40] sm:$0xff] %v206
    %355 = vst [vmem:[#allocation2 + $0x48] sm:$0xff] %v247
    %356 = vst [vmem:[#allocation2 + $0x50] sm:$0xff] %v288
    %357 = vst [vmem:[#allocation2 + $0x58] sm:$0xff] %v329
    %358 = vst [vmem:[#allocation2 + $0x60] sm:$0xff] %v209
    %359 = vst [vmem:[#allocation2 + $0x68] sm:$0xff] %v250
    %360 = vst [vmem:[#allocation2 + $0x70] sm:$0xff] %v291
    %361 = vst [vmem:[#allocation2 + $0x78] sm:$0xff] %v332
    %362 = vst [vmem:[#allocation2 + $0x80] sm:$0xff] %v212
    %363 = vst [vmem:[#allocation2 + $0x88] sm:$0xff] %v253
    %364 = vst [vmem:[#allocation2 + $0x90] sm:$0xff] %v294
    %365 = vst [vmem:[#allocation2 + $0x98] sm:$0xff] %v335
    %366 = vst [vmem:[#allocation2 + $0xa0] sm:$0xff] %v215
    %367 = vst [vmem:[#allocation2 + $0xa8] sm:$0xff] %v256
    %368 = vst [vmem:[#allocation2 + $0xb0] sm:$0xff] %v297
    %369 = vst [vmem:[#allocation2 + $0xb8] sm:$0xff] %v338
    %370 = vst [vmem:[#allocation2 + $0xc0] sm:$0xff] %v218
    %371 = vst [vmem:[#allocation2 + $0xc8] sm:$0xff] %v259
    %372 = vst [vmem:[#allocation2 + $0xd0] sm:$0xff] %v300
    %373 = vst [vmem:[#allocation2 + $0xd8] sm:$0xff] %v341
    %374 = vst [vmem:[#allocation2 + $0xe0] sm:$0xff] %v221
    %375 = vst [vmem:[#allocation2 + $0xe8] sm:$0xff] %v262
    %376 = vst [vmem:[#allocation2 + $0xf0] sm:$0xff] %v303
    %377 = vst [vmem:[#allocation2 + $0xf8] sm:$0xff] %v344
    %v378 = vld [vmem:[#allocation2] sm:$0xff]
    %v379 = vld [vmem:[#allocation2 + $0x8] sm:$0xff]
    %v380 = vld [vmem:[#allocation2 + $0x10] sm:$0xff]
    %v381 = vld [vmem:[#allocation2 + $0x18] sm:$0xff]
    %v382 = vld [vmem:[#allocation8] sm:$0xff]
    %v383 = vld [vmem:[#allocation8 + $0x8] sm:$0xff]
    %v384 = vld [vmem:[#allocation8 + $0x10] sm:$0xff]
    %v385 = vld [vmem:[#allocation8 + $0x18] sm:$0xff]
    %v386 = vld [vmem:[#allocation8 + $0x20] sm:$0xff]
    %v387 = vld [vmem:[#allocation8 + $0x28] sm:$0xff]
    %v388 = vld [vmem:[#allocation8 + $0x30] sm:$0xff]
    %v389 = vld [vmem:[#allocation8 + $0x38] sm:$0xff]
    %v390 = vld [vmem:[#allocation8 + $0x40] sm:$0xff]
    %v391 = vld [vmem:[#allocation8 + $0x48] sm:$0xff]
    %v392 = vld [vmem:[#allocation8 + $0x50] sm:$0xff]
    %v393 = vld [vmem:[#allocation8 + $0x58] sm:$0xff]
    %v394 = vld [vmem:[#allocation8 + $0x60] sm:$0xff]
    %v395 = vld [vmem:[#allocation8 + $0x68] sm:$0xff]
    %v396 = vld [vmem:[#allocation8 + $0x70] sm:$0xff]
    %v397 = vld [vmem:[#allocation8 + $0x78] sm:$0xff]
    %v398 = vld [vmem:[#allocation8 + $0x80] sm:$0xff]
    %v399 = vld [vmem:[#allocation8 + $0x88] sm:$0xff]
    %v400 = vld [vmem:[#allocation8 + $0x90] sm:$0xff]
    %v401 = vld [vmem:[#allocation8 + $0x98] sm:$0xff]
    %v402 = vld [vmem:[#allocation8 + $0xa0] sm:$0xff]
    %v403 = vld [vmem:[#allocation8 + $0xa8] sm:$0xff]
    %v404 = vld [vmem:[#allocation8 + $0xb0] sm:$0xff]
    %v405 = vld [vmem:[#allocation8 + $0xb8] sm:$0xff]
    %v406 = vld [vmem:[#allocation8 + $0xc0] sm:$0xff]
    %v407 = vld [vmem:[#allocation8 + $0xc8] sm:$0xff]
    %v408 = vld [vmem:[#allocation8 + $0xd0] sm:$0xff]
    %v409 = vld [vmem:[#allocation8 + $0xd8] sm:$0xff]
    %v410 = vld [vmem:[#allocation8 + $0xe0] sm:$0xff]
    %v411 = vld [vmem:[#allocation8 + $0xe8] sm:$0xff]
    %v412 = vld [vmem:[#allocation8 + $0xf0] sm:$0xff]
    %v413 = vld [vmem:[#allocation8 + $0xf8] sm:$0xff]
    %v414 = vld [vmem:[#allocation8 + $0x100] sm:$0xff]
    %v415 = vld [vmem:[#allocation8 + $0x108] sm:$0xff]
    %v416 = vld [vmem:[#allocation8 + $0x110] sm:$0xff]
    %v417 = vld [vmem:[#allocation8 + $0x118] sm:$0xff]
    %v418 = vld [vmem:[#allocation8 + $0x120] sm:$0xff]
    %v419 = vld [vmem:[#allocation8 + $0x128] sm:$0xff]
    %v420 = vld [vmem:[#allocation8 + $0x130] sm:$0xff]
    %v421 = vld [vmem:[#allocation8 + $0x138] sm:$0xff]
    %v422 = vld [vmem:[#allocation8 + $0x140] sm:$0xff]
    %v423 = vld [vmem:[#allocation8 + $0x148] sm:$0xff]
    %v424 = vld [vmem:[#allocation8 + $0x150] sm:$0xff]
    %v425 = vld [vmem:[#allocation8 + $0x158] sm:$0xff]
    %v426 = vld [vmem:[#allocation8 + $0x160] sm:$0xff]
    %v427 = vld [vmem:[#allocation8 + $0x168] sm:$0xff]
    %v428 = vld [vmem:[#allocation8 + $0x170] sm:$0xff]
    %v429 = vld [vmem:[#allocation8 + $0x178] sm:$0xff]
    %v430 = vld [vmem:[#allocation8 + $0x180] sm:$0xff]
    %v431 = vld [vmem:[#allocation8 + $0x188] sm:$0xff]
    %v432 = vld [vmem:[#allocation8 + $0x190] sm:$0xff]
    %v433 = vld [vmem:[#allocation8 + $0x198] sm:$0xff]
    %v434 = vld [vmem:[#allocation8 + $0x1a0] sm:$0xff]
    %v435 = vld [vmem:[#allocation8 + $0x1a8] sm:$0xff]
    %v436 = vld [vmem:[#allocation8 + $0x1b0] sm:$0xff]
    %v437 = vld [vmem:[#allocation8 + $0x1b8] sm:$0xff]
    %v438 = vld [vmem:[#allocation8 + $0x1c0] sm:$0xff]
    %v439 = vld [vmem:[#allocation8 + $0x1c8] sm:$0xff]
    %v440 = vld [vmem:[#allocation8 + $0x1d0] sm:$0xff]
    %v441 = vld [vmem:[#allocation8 + $0x1d8] sm:$0xff]
    %v442 = vld [vmem:[#allocation8 + $0x1e0] sm:$0xff]
    %v443 = vld [vmem:[#allocation8 + $0x1e8] sm:$0xff]
    %v444 = vld [vmem:[#allocation8 + $0x1f0] sm:$0xff]
    %v445 = vld [vmem:[#allocation8 + $0x1f8] sm:$0xff]
    %446 = vmatpush.msra.mxu0 %v442
    %447 = vmatpush.msra.mxu0 %v438
    %448 = vmatpush.msra.mxu0 %v434
    %449 = vmatpush.msra.mxu0 %v430
    %450 = vmatpush.msra.mxu0 %v426
    %451 = vmatpush.msra.mxu0 %v422
    %452 = vmatpush.msra.mxu0 %v418
    %453 = vmatpush.msra.mxu0 %v414
    %454 = vmatpush.msra.mxu0 %v410
    %455 = vmatpush.msra.mxu0 %v406
    %456 = vmatpush.msra.mxu0 %v402
    %457 = vmatpush.msra.mxu0 %v398
    %458 = vmatpush.msra.mxu0 %v394
    %459 = vmatpush.msra.mxu0 %v390
    %460 = vmatpush.msra.mxu0 %v386
    %461 = vmatpush.msra.mxu0 %v382
    %462 = vmatmul.f32.gmra.mxu0 0.0
    %v463 = vpop.f32.mrf.mxu0
    %v464 = vadd.f32 0.0, %v463
    %465 = vdwg.mxu0
    %466 = vmatpush.msra.mxu0 %v443
    %467 = vmatpush.msra.mxu0 %v439
    %468 = vmatpush.msra.mxu0 %v435
    %469 = vmatpush.msra.mxu0 %v431
    %470 = vmatpush.msra.mxu0 %v427
    %471 = vmatpush.msra.mxu0 %v423
    %472 = vmatpush.msra.mxu0 %v419
    %473 = vmatpush.msra.mxu0 %v415
    %474 = vmatpush.msra.mxu0 %v411
    %475 = vmatpush.msra.mxu0 %v407
    %476 = vmatpush.msra.mxu0 %v403
    %477 = vmatpush.msra.mxu0 %v399
    %478 = vmatpush.msra.mxu0 %v395
    %479 = vmatpush.msra.mxu0 %v391
    %480 = vmatpush.msra.mxu0 %v387
    %481 = vmatpush.msra.mxu0 %v383
    %482 = vmatmul.f32.gmra.mxu0 0.0
    %v483 = vpop.f32.mrf.mxu0
    %v484 = vadd.f32 0.0, %v483
    %485 = vdwg.mxu0
    %486 = vmatpush.msra.mxu0 %v444
    %487 = vmatpush.msra.mxu0 %v440
    %488 = vmatpush.msra.mxu0 %v436
    %489 = vmatpush.msra.mxu0 %v432
    %490 = vmatpush.msra.mxu0 %v428
    %491 = vmatpush.msra.mxu0 %v424
    %492 = vmatpush.msra.mxu0 %v420
    %493 = vmatpush.msra.mxu0 %v416
    %494 = vmatpush.msra.mxu0 %v412
    %495 = vmatpush.msra.mxu0 %v408
    %496 = vmatpush.msra.mxu0 %v404
    %497 = vmatpush.msra.mxu0 %v400
    %498 = vmatpush.msra.mxu0 %v396
    %499 = vmatpush.msra.mxu0 %v392
    %500 = vmatpush.msra.mxu0 %v388
    %501 = vmatpush.msra.mxu0 %v384
    %502 = vmatmul.f32.gmra.mxu0 0.0
    %v503 = vpop.f32.mrf.mxu0
    %v504 = vadd.f32 0.0, %v503
    %505 = vdwg.mxu0
    %506 = vmatpush.msra.mxu0 %v445
    %507 = vmatpush.msra.mxu0 %v441
    %508 = vmatpush.msra.mxu0 %v437
    %509 = vmatpush.msra.mxu0 %v433
    %510 = vmatpush.msra.mxu0 %v429
    %511 = vmatpush.msra.mxu0 %v425
    %512 = vmatpush.msra.mxu0 %v421
    %513 = vmatpush.msra.mxu0 %v417
    %514 = vmatpush.msra.mxu0 %v413
    %515 = vmatpush.msra.mxu0 %v409
    %516 = vmatpush.msra.mxu0 %v405
    %517 = vmatpush.msra.mxu0 %v401
    %518 = vmatpush.msra.mxu0 %v397
    %519 = vmatpush.msra.mxu0 %v393
    %520 = vmatpush.msra.mxu0 %v389
    %521 = vmatpush.msra.mxu0 %v385
    %522 = vmatmul.f32.gmra.mxu0 0.0
    %v523 = vpop.f32.mrf.mxu0
    %v524 = vadd.f32 0.0, %v523
    %525 = vdwg.mxu0
    %v526 = vadd.f32 %v378, %v464
    %v527 = vadd.f32 %v379, %v484
    %v528 = vadd.f32 %v380, %v504
    %v529 = vadd.f32 %v381, %v524
    %v530 = vxor.u32 %v526, 2147483648
    %v531 = vmul.f32 %v530, 1.442695
    %v532 = vpow.pop %v531
    %v533 = vadd.f32 %v532, 1.0
    %v534 = vrcp.pop %v533
    %v535 = vmul.f32 %v533, %v534
    %v536 = vsub.f32 1.0, %v535
    %v537 = vmul.f32 %v534, %v536
    %v538 = vadd.f32 %v534, %v537
    %vm539 = vweird.f32 %v533
    %vm540 = vweird.f32 %v534
    %vm541 = vmor %vm539, %vm540
    %v542 = vsel %vm541, %v534, %v538
    %v543 = vand.u32 2147483647, %v533
    %vm544 = vcmp.eq.f32.partialorder %v543, 8.507059e+37
    %v545 = vand.u32 %v533, 2147483648
    %v546 = vor.u32 1.1754944e-38, %v545
    %v547 = vsel %vm544, %v546, %v542
    %v548 = vmul.f32 1.0, %v547
    %v549 = vxor.u32 %v527, 2147483648
    %v550 = vmul.f32 %v549, 1.442695
    %v551 = vpow.pop %v550
    %v552 = vadd.f32 %v551, 1.0
    %v553 = vrcp.pop %v552
    %v554 = vmul.f32 %v552, %v553
    %v555 = vsub.f32 1.0, %v554
    %v556 = vmul.f32 %v553, %v555
    %v557 = vadd.f32 %v553, %v556
    %vm558 = vweird.f32 %v552
    %vm559 = vweird.f32 %v553
    %vm560 = vmor %vm558, %vm559
    %v561 = vsel %vm560, %v553, %v557
    %v562 = vand.u32 2147483647, %v552
    %vm563 = vcmp.eq.f32.partialorder %v562, 8.507059e+37
    %v564 = vand.u32 %v552, 2147483648
    %v565 = vor.u32 1.1754944e-38, %v564
    %v566 = vsel %vm563, %v565, %v561
    %v567 = vmul.f32 1.0, %v566
    %v568 = vtanh.pop %v528
    %v569 = vxor.u32 %v529, 2147483648
    %v570 = vmul.f32 %v569, 1.442695
    %v571 = vpow.pop %v570
    %v572 = vadd.f32 %v571, 1.0
    %v573 = vrcp.pop %v572
    %v574 = vmul.f32 %v572, %v573
    %v575 = vsub.f32 1.0, %v574
    %v576 = vmul.f32 %v573, %v575
    %v577 = vadd.f32 %v573, %v576
    %vm578 = vweird.f32 %v572
    %vm579 = vweird.f32 %v573
    %vm580 = vmor %vm578, %vm579
    %v581 = vsel %vm580, %v573, %v577
    %v582 = vand.u32 2147483647, %v572
    %vm583 = vcmp.eq.f32.partialorder %v582, 8.507059e+37
    %v584 = vand.u32 %v572, 2147483648
    %v585 = vor.u32 1.1754944e-38, %v584
    %v586 = vsel %vm583, %v585, %v581
    %v587 = vmul.f32 1.0, %v586
    %v588 = vmul.f32 %v567, 0.0
    %v589 = vmul.f32 %v548, %v568
    %v590 = vadd.f32 %v588, %v589
    %v591 = vtanh.pop %v590
    %v592 = vmul.f32 %v587, %v591
    %s593 = scalar_lea.vmem [#allocation2], 32
    %v594 = vld [vmem:[%s593] sm:$0xff]
    %v595 = vld [vmem:[%s593 + $0x8] sm:$0xff]
    %v596 = vld [vmem:[%s593 + $0x10] sm:$0xff]
    %v597 = vld [vmem:[%s593 + $0x18] sm:$0xff]
    %598 = vmatpush.msra.mxu0 %v442
    %599 = vmatpush.msra.mxu0 %v438
    %600 = vmatpush.msra.mxu0 %v434
    %601 = vmatpush.msra.mxu0 %v430
    %602 = vmatpush.msra.mxu0 %v426
    %603 = vmatpush.msra.mxu0 %v422
    %604 = vmatpush.msra.mxu0 %v418
    %605 = vmatpush.msra.mxu0 %v414
    %606 = vmatpush.msra.mxu0 %v410
    %607 = vmatpush.msra.mxu0 %v406
    %608 = vmatpush.msra.mxu0 %v402
    %609 = vmatpush.msra.mxu0 %v398
    %610 = vmatpush.msra.mxu0 %v394
    %611 = vmatpush.msra.mxu0 %v390
    %612 = vmatpush.msra.mxu0 %v386
    %613 = vmatpush.msra.mxu0 %v382
    %614 = vmatmul.f32.gmra.mxu0 %v592
    %v615 = vpop.f32.mrf.mxu0
    %v616 = vadd.f32 0.0, %v615
    %617 = vdwg.mxu0
    %618 = vmatpush.msra.mxu0 %v443
    %619 = vmatpush.msra.mxu0 %v439
    %620 = vmatpush.msra.mxu0 %v435
    %621 = vmatpush.msra.mxu0 %v431
    %622 = vmatpush.msra.mxu0 %v427
    %623 = vmatpush.msra.mxu0 %v423
    %624 = vmatpush.msra.mxu0 %v419
    %625 = vmatpush.msra.mxu0 %v415
    %626 = vmatpush.msra.mxu0 %v411
    %627 = vmatpush.msra.mxu0 %v407
    %628 = vmatpush.msra.mxu0 %v403
    %629 = vmatpush.msra.mxu0 %v399
    %630 = vmatpush.msra.mxu0 %v395
    %631 = vmatpush.msra.mxu0 %v391
    %632 = vmatpush.msra.mxu0 %v387
    %633 = vmatpush.msra.mxu0 %v383
    %634 = vmatmul.f32.gmra.mxu0 %v592
    %v635 = vpop.f32.mrf.mxu0
    %v636 = vadd.f32 0.0, %v635
    %637 = vdwg.mxu0
    %638 = vmatpush.msra.mxu0 %v444
    %639 = vmatpush.msra.mxu0 %v440
    %640 = vmatpush.msra.mxu0 %v436
    %641 = vmatpush.msra.mxu0 %v432
    %642 = vmatpush.msra.mxu0 %v428
    %643 = vmatpush.msra.mxu0 %v424
    %644 = vmatpush.msra.mxu0 %v420
    %645 = vmatpush.msra.mxu0 %v416
    %646 = vmatpush.msra.mxu0 %v412
    %647 = vmatpush.msra.mxu0 %v408
    %648 = vmatpush.msra.mxu0 %v404
    %649 = vmatpush.msra.mxu0 %v400
    %650 = vmatpush.msra.mxu0 %v396
    %651 = vmatpush.msra.mxu0 %v392
    %652 = vmatpush.msra.mxu0 %v388
    %653 = vmatpush.msra.mxu0 %v384
    %654 = vmatmul.f32.gmra.mxu0 %v592
    %v655 = vpop.f32.mrf.mxu0
    %v656 = vadd.f32 0.0, %v655
    %657 = vdwg.mxu0
    %658 = vmatpush.msra.mxu0 %v445
    %659 = vmatpush.msra.mxu0 %v441
    %660 = vmatpush.msra.mxu0 %v437
    %661 = vmatpush.msra.mxu0 %v433
    %662 = vmatpush.msra.mxu0 %v429
    %663 = vmatpush.msra.mxu0 %v425
    %664 = vmatpush.msra.mxu0 %v421
    %665 = vmatpush.msra.mxu0 %v417
    %666 = vmatpush.msra.mxu0 %v413
    %667 = vmatpush.msra.mxu0 %v409
    %668 = vmatpush.msra.mxu0 %v405
    %669 = vmatpush.msra.mxu0 %v401
    %670 = vmatpush.msra.mxu0 %v397
    %671 = vmatpush.msra.mxu0 %v393
    %672 = vmatpush.msra.mxu0 %v389
    %673 = vmatpush.msra.mxu0 %v385
    %674 = vmatmul.f32.gmra.mxu0 %v592
    %v675 = vpop.f32.mrf.mxu0
    %v676 = vadd.f32 0.0, %v675
    %677 = vdwg.mxu0
    %v678 = vadd.f32 %v594, %v616
    %v679 = vadd.f32 %v595, %v636
    %v680 = vadd.f32 %v596, %v656
    %v681 = vadd.f32 %v597, %v676
    %v682 = vxor.u32 %v678, 2147483648
    %v683 = vmul.f32 %v682, 1.442695
    %v684 = vpow.pop %v683
    %v685 = vadd.f32 %v684, 1.0
    %v686 = vrcp.pop %v685
    %v687 = vmul.f32 %v685, %v686
    %v688 = vsub.f32 1.0, %v687
    %v689 = vmul.f32 %v686, %v688
    %v690 = vadd.f32 %v686, %v689
    %vm691 = vweird.f32 %v685
    %vm692 = vweird.f32 %v686
    %vm693 = vmor %vm691, %vm692
    %v694 = vsel %vm693, %v686, %v690
    %v695 = vand.u32 2147483647, %v685
    %vm696 = vcmp.eq.f32.partialorder %v695, 8.507059e+37
    %v697 = vand.u32 %v685, 2147483648
    %v698 = vor.u32 1.1754944e-38, %v697
    %v699 = vsel %vm696, %v698, %v694
    %v700 = vmul.f32 1.0, %v699
    %v701 = vxor.u32 %v679, 2147483648
    %v702 = vmul.f32 %v701, 1.442695
    %v703 = vpow.pop %v702
    %v704 = vadd.f32 %v703, 1.0
    %v705 = vrcp.pop %v704
    %v706 = vmul.f32 %v704, %v705
    %v707 = vsub.f32 1.0, %v706
    %v708 = vmul.f32 %v705, %v707
    %v709 = vadd.f32 %v705, %v708
    %vm710 = vweird.f32 %v704
    %vm711 = vweird.f32 %v705
    %vm712 = vmor %vm710, %vm711
    %v713 = vsel %vm712, %v705, %v709
    %v714 = vand.u32 2147483647, %v704
    %vm715 = vcmp.eq.f32.partialorder %v714, 8.507059e+37
    %v716 = vand.u32 %v704, 2147483648
    %v717 = vor.u32 1.1754944e-38, %v716
    %v718 = vsel %vm715, %v717, %v713
    %v719 = vmul.f32 1.0, %v718
    %v720 = vtanh.pop %v680
    %v721 = vxor.u32 %v681, 2147483648
    %v722 = vmul.f32 %v721, 1.442695
    %v723 = vpow.pop %v722
    %v724 = vadd.f32 %v723, 1.0
    %v725 = vrcp.pop %v724
    %v726 = vmul.f32 %v724, %v725
    %v727 = vsub.f32 1.0, %v726
    %v728 = vmul.f32 %v725, %v727
    %v729 = vadd.f32 %v725, %v728
    %vm730 = vweird.f32 %v724
    %vm731 = vweird.f32 %v725
    %vm732 = vmor %vm730, %vm731
    %v733 = vsel %vm732, %v725, %v729
    %v734 = vand.u32 2147483647, %v724
    %vm735 = vcmp.eq.f32.partialorder %v734, 8.507059e+37
    %v736 = vand.u32 %v724, 2147483648
    %v737 = vor.u32 1.1754944e-38, %v736
    %v738 = vsel %vm735, %v737, %v733
    %v739 = vmul.f32 1.0, %v738
    %v740 = vmul.f32 %v719, %v590
    %v741 = vmul.f32 %v700, %v720
    %v742 = vadd.f32 %v740, %v741
    %v743 = vtanh.pop %v742
    %v744 = vmul.f32 %v739, %v743
    %s745 = scalar_lea.vmem [#allocation2], 64
    %v746 = vld [vmem:[%s745] sm:$0xff]
    %v747 = vld [vmem:[%s745 + $0x8] sm:$0xff]
    %v748 = vld [vmem:[%s745 + $0x10] sm:$0xff]
    %v749 = vld [vmem:[%s745 + $0x18] sm:$0xff]
    %750 = vmatpush.msra.mxu0 %v442
    %751 = vmatpush.msra.mxu0 %v438
    %752 = vmatpush.msra.mxu0 %v434
    %753 = vmatpush.msra.mxu0 %v430
    %754 = vmatpush.msra.mxu0 %v426
    %755 = vmatpush.msra.mxu0 %v422
    %756 = vmatpush.msra.mxu0 %v418
    %757 = vmatpush.msra.mxu0 %v414
    %758 = vmatpush.msra.mxu0 %v410
    %759 = vmatpush.msra.mxu0 %v406
    %760 = vmatpush.msra.mxu0 %v402
    %761 = vmatpush.msra.mxu0 %v398
    %762 = vmatpush.msra.mxu0 %v394
    %763 = vmatpush.msra.mxu0 %v390
    %764 = vmatpush.msra.mxu0 %v386
    %765 = vmatpush.msra.mxu0 %v382
    %766 = vmatmul.f32.gmra.mxu0 %v744
    %v767 = vpop.f32.mrf.mxu0
    %v768 = vadd.f32 0.0, %v767
    %769 = vdwg.mxu0
    %770 = vmatpush.msra.mxu0 %v443
    %771 = vmatpush.msra.mxu0 %v439
    %772 = vmatpush.msra.mxu0 %v435
    %773 = vmatpush.msra.mxu0 %v431
    %774 = vmatpush.msra.mxu0 %v427
    %775 = vmatpush.msra.mxu0 %v423
    %776 = vmatpush.msra.mxu0 %v419
    %777 = vmatpush.msra.mxu0 %v415
    %778 = vmatpush.msra.mxu0 %v411
    %779 = vmatpush.msra.mxu0 %v407
    %780 = vmatpush.msra.mxu0 %v403
    %781 = vmatpush.msra.mxu0 %v399
    %782 = vmatpush.msra.mxu0 %v395
    %783 = vmatpush.msra.mxu0 %v391
    %784 = vmatpush.msra.mxu0 %v387
    %785 = vmatpush.msra.mxu0 %v383
    %786 = vmatmul.f32.gmra.mxu0 %v744
    %v787 = vpop.f32.mrf.mxu0
    %v788 = vadd.f32 0.0, %v787
    %789 = vdwg.mxu0
    %790 = vmatpush.msra.mxu0 %v444
    %791 = vmatpush.msra.mxu0 %v440
    %792 = vmatpush.msra.mxu0 %v436
    %793 = vmatpush.msra.mxu0 %v432
    %794 = vmatpush.msra.mxu0 %v428
    %795 = vmatpush.msra.mxu0 %v424
    %796 = vmatpush.msra.mxu0 %v420
    %797 = vmatpush.msra.mxu0 %v416
    %798 = vmatpush.msra.mxu0 %v412
    %799 = vmatpush.msra.mxu0 %v408
    %800 = vmatpush.msra.mxu0 %v404
    %801 = vmatpush.msra.mxu0 %v400
    %802 = vmatpush.msra.mxu0 %v396
    %803 = vmatpush.msra.mxu0 %v392
    %804 = vmatpush.msra.mxu0 %v388
    %805 = vmatpush.msra.mxu0 %v384
    %806 = vmatmul.f32.gmra.mxu0 %v744
    %v807 = vpop.f32.mrf.mxu0
    %v808 = vadd.f32 0.0, %v807
    %809 = vdwg.mxu0
    %810 = vmatpush.msra.mxu0 %v445
    %811 = vmatpush.msra.mxu0 %v441
    %812 = vmatpush.msra.mxu0 %v437
    %813 = vmatpush.msra.mxu0 %v433
    %814 = vmatpush.msra.mxu0 %v429
    %815 = vmatpush.msra.mxu0 %v425
    %816 = vmatpush.msra.mxu0 %v421
    %817 = vmatpush.msra.mxu0 %v417
    %818 = vmatpush.msra.mxu0 %v413
    %819 = vmatpush.msra.mxu0 %v409
    %820 = vmatpush.msra.mxu0 %v405
    %821 = vmatpush.msra.mxu0 %v401
    %822 = vmatpush.msra.mxu0 %v397
    %823 = vmatpush.msra.mxu0 %v393
    %824 = vmatpush.msra.mxu0 %v389
    %825 = vmatpush.msra.mxu0 %v385
    %826 = vmatmul.f32.gmra.mxu0 %v744
    %v827 = vpop.f32.mrf.mxu0
    %v828 = vadd.f32 0.0, %v827
    %829 = vdwg.mxu0
    %v830 = vadd.f32 %v746, %v768
    %v831 = vadd.f32 %v747, %v788
    %v832 = vadd.f32 %v748, %v808
    %v833 = vadd.f32 %v749, %v828
    %v834 = vxor.u32 %v830, 2147483648
    %v835 = vmul.f32 %v834, 1.442695
    %v836 = vpow.pop %v835
    %v837 = vadd.f32 %v836, 1.0
    %v838 = vrcp.pop %v837
    %v839 = vmul.f32 %v837, %v838
    %v840 = vsub.f32 1.0, %v839
    %v841 = vmul.f32 %v838, %v840
    %v842 = vadd.f32 %v838, %v841
    %vm843 = vweird.f32 %v837
    %vm844 = vweird.f32 %v838
    %vm845 = vmor %vm843, %vm844
    %v846 = vsel %vm845, %v838, %v842
    %v847 = vand.u32 2147483647, %v837
    %vm848 = vcmp.eq.f32.partialorder %v847, 8.507059e+37
    %v849 = vand.u32 %v837, 2147483648
    %v850 = vor.u32 1.1754944e-38, %v849
    %v851 = vsel %vm848, %v850, %v846
    %v852 = vmul.f32 1.0, %v851
    %v853 = vxor.u32 %v831, 2147483648
    %v854 = vmul.f32 %v853, 1.442695
    %v855 = vpow.pop %v854
    %v856 = vadd.f32 %v855, 1.0
    %v857 = vrcp.pop %v856
    %v858 = vmul.f32 %v856, %v857
    %v859 = vsub.f32 1.0, %v858
    %v860 = vmul.f32 %v857, %v859
    %v861 = vadd.f32 %v857, %v860
    %vm862 = vweird.f32 %v856
    %vm863 = vweird.f32 %v857
    %vm864 = vmor %vm862, %vm863
    %v865 = vsel %vm864, %v857, %v861
    %v866 = vand.u32 2147483647, %v856
    %vm867 = vcmp.eq.f32.partialorder %v866, 8.507059e+37
    %v868 = vand.u32 %v856, 2147483648
    %v869 = vor.u32 1.1754944e-38, %v868
    %v870 = vsel %vm867, %v869, %v865
    %v871 = vmul.f32 1.0, %v870
    %v872 = vtanh.pop %v832
    %v873 = vxor.u32 %v833, 2147483648
    %v874 = vmul.f32 %v873, 1.442695
    %v875 = vpow.pop %v874
    %v876 = vadd.f32 %v875, 1.0
    %v877 = vrcp.pop %v876
    %v878 = vmul.f32 %v876, %v877
    %v879 = vsub.f32 1.0, %v878
    %v880 = vmul.f32 %v877, %v879
    %v881 = vadd.f32 %v877, %v880
    %vm882 = vweird.f32 %v876
    %vm883 = vweird.f32 %v877
    %vm884 = vmor %vm882, %vm883
    %v885 = vsel %vm884, %v877, %v881
    %v886 = vand.u32 2147483647, %v876
    %vm887 = vcmp.eq.f32.partialorder %v886, 8.507059e+37
    %v888 = vand.u32 %v876, 2147483648
    %v889 = vor.u32 1.1754944e-38, %v888
    %v890 = vsel %vm887, %v889, %v885
    %v891 = vmul.f32 1.0, %v890
    %v892 = vmul.f32 %v871, %v742
    %v893 = vmul.f32 %v852, %v872
    %v894 = vadd.f32 %v892, %v893
    %v895 = vtanh.pop %v894
    %v896 = vmul.f32 %v891, %v895
    %s897 = scalar_lea.vmem [#allocation2], 96
    %v898 = vld [vmem:[%s897] sm:$0xff]
    %v899 = vld [vmem:[%s897 + $0x8] sm:$0xff]
    %v900 = vld [vmem:[%s897 + $0x10] sm:$0xff]
    %v901 = vld [vmem:[%s897 + $0x18] sm:$0xff]
    %902 = vmatpush.msra.mxu0 %v442
    %903 = vmatpush.msra.mxu0 %v438
    %904 = vmatpush.msra.mxu0 %v434
    %905 = vmatpush.msra.mxu0 %v430
    %906 = vmatpush.msra.mxu0 %v426
    %907 = vmatpush.msra.mxu0 %v422
    %908 = vmatpush.msra.mxu0 %v418
    %909 = vmatpush.msra.mxu0 %v414
    %910 = vmatpush.msra.mxu0 %v410
    %911 = vmatpush.msra.mxu0 %v406
    %912 = vmatpush.msra.mxu0 %v402
    %913 = vmatpush.msra.mxu0 %v398
    %914 = vmatpush.msra.mxu0 %v394
    %915 = vmatpush.msra.mxu0 %v390
    %916 = vmatpush.msra.mxu0 %v386
    %917 = vmatpush.msra.mxu0 %v382
    %918 = vmatmul.f32.gmra.mxu0 %v896
    %v919 = vpop.f32.mrf.mxu0
    %v920 = vadd.f32 0.0, %v919
    %921 = vdwg.mxu0
    %922 = vmatpush.msra.mxu0 %v443
    %923 = vmatpush.msra.mxu0 %v439
    %924 = vmatpush.msra.mxu0 %v435
    %925 = vmatpush.msra.mxu0 %v431
    %926 = vmatpush.msra.mxu0 %v427
    %927 = vmatpush.msra.mxu0 %v423
    %928 = vmatpush.msra.mxu0 %v419
    %929 = vmatpush.msra.mxu0 %v415
    %930 = vmatpush.msra.mxu0 %v411
    %931 = vmatpush.msra.mxu0 %v407
    %932 = vmatpush.msra.mxu0 %v403
    %933 = vmatpush.msra.mxu0 %v399
    %934 = vmatpush.msra.mxu0 %v395
    %935 = vmatpush.msra.mxu0 %v391
    %936 = vmatpush.msra.mxu0 %v387
    %937 = vmatpush.msra.mxu0 %v383
    %938 = vmatmul.f32.gmra.mxu0 %v896
    %v939 = vpop.f32.mrf.mxu0
    %v940 = vadd.f32 0.0, %v939
    %941 = vdwg.mxu0
    %942 = vmatpush.msra.mxu0 %v444
    %943 = vmatpush.msra.mxu0 %v440
    %944 = vmatpush.msra.mxu0 %v436
    %945 = vmatpush.msra.mxu0 %v432
    %946 = vmatpush.msra.mxu0 %v428
    %947 = vmatpush.msra.mxu0 %v424
    %948 = vmatpush.msra.mxu0 %v420
    %949 = vmatpush.msra.mxu0 %v416
    %950 = vmatpush.msra.mxu0 %v412
    %951 = vmatpush.msra.mxu0 %v408
    %952 = vmatpush.msra.mxu0 %v404
    %953 = vmatpush.msra.mxu0 %v400
    %954 = vmatpush.msra.mxu0 %v396
    %955 = vmatpush.msra.mxu0 %v392
    %956 = vmatpush.msra.mxu0 %v388
    %957 = vmatpush.msra.mxu0 %v384
    %958 = vmatmul.f32.gmra.mxu0 %v896
    %v959 = vpop.f32.mrf.mxu0
    %v960 = vadd.f32 0.0, %v959
    %961 = vdwg.mxu0
    %962 = vmatpush.msra.mxu0 %v445
    %963 = vmatpush.msra.mxu0 %v441
    %964 = vmatpush.msra.mxu0 %v437
    %965 = vmatpush.msra.mxu0 %v433
    %966 = vmatpush.msra.mxu0 %v429
    %967 = vmatpush.msra.mxu0 %v425
    %968 = vmatpush.msra.mxu0 %v421
    %969 = vmatpush.msra.mxu0 %v417
    %970 = vmatpush.msra.mxu0 %v413
    %971 = vmatpush.msra.mxu0 %v409
    %972 = vmatpush.msra.mxu0 %v405
    %973 = vmatpush.msra.mxu0 %v401
    %974 = vmatpush.msra.mxu0 %v397
    %975 = vmatpush.msra.mxu0 %v393
    %976 = vmatpush.msra.mxu0 %v389
    %977 = vmatpush.msra.mxu0 %v385
    %978 = vmatmul.f32.gmra.mxu0 %v896
    %v979 = vpop.f32.mrf.mxu0
    %v980 = vadd.f32 0.0, %v979
    %981 = vdwg.mxu0
    %v982 = vadd.f32 %v898, %v920
    %v983 = vadd.f32 %v899, %v940
    %v984 = vadd.f32 %v900, %v960
    %v985 = vadd.f32 %v901, %v980
    %v986 = vxor.u32 %v982, 2147483648
    %v987 = vmul.f32 %v986, 1.442695
    %v988 = vpow.pop %v987
    %v989 = vadd.f32 %v988, 1.0
    %v990 = vrcp.pop %v989
    %v991 = vmul.f32 %v989, %v990
    %v992 = vsub.f32 1.0, %v991
    %v993 = vmul.f32 %v990, %v992
    %v994 = vadd.f32 %v990, %v993
    %vm995 = vweird.f32 %v989
    %vm996 = vweird.f32 %v990
    %vm997 = vmor %vm995, %vm996
    %v998 = vsel %vm997, %v990, %v994
    %v999 = vand.u32 2147483647, %v989
    %vm1000 = vcmp.eq.f32.partialorder %v999, 8.507059e+37
    %v1001 = vand.u32 %v989, 2147483648
    %v1002 = vor.u32 1.1754944e-38, %v1001
    %v1003 = vsel %vm1000, %v1002, %v998
    %v1004 = vmul.f32 1.0, %v1003
    %v1005 = vxor.u32 %v983, 2147483648
    %v1006 = vmul.f32 %v1005, 1.442695
    %v1007 = vpow.pop %v1006
    %v1008 = vadd.f32 %v1007, 1.0
    %v1009 = vrcp.pop %v1008
    %v1010 = vmul.f32 %v1008, %v1009
    %v1011 = vsub.f32 1.0, %v1010
    %v1012 = vmul.f32 %v1009, %v1011
    %v1013 = vadd.f32 %v1009, %v1012
    %vm1014 = vweird.f32 %v1008
    %vm1015 = vweird.f32 %v1009
    %vm1016 = vmor %vm1014, %vm1015
    %v1017 = vsel %vm1016, %v1009, %v1013
    %v1018 = vand.u32 2147483647, %v1008
    %vm1019 = vcmp.eq.f32.partialorder %v1018, 8.507059e+37
    %v1020 = vand.u32 %v1008, 2147483648
    %v1021 = vor.u32 1.1754944e-38, %v1020
    %v1022 = vsel %vm1019, %v1021, %v1017
    %v1023 = vmul.f32 1.0, %v1022
    %v1024 = vtanh.pop %v984
    %v1025 = vxor.u32 %v985, 2147483648
    %v1026 = vmul.f32 %v1025, 1.442695
    %v1027 = vpow.pop %v1026
    %v1028 = vadd.f32 %v1027, 1.0
    %v1029 = vrcp.pop %v1028
    %v1030 = vmul.f32 %v1028, %v1029
    %v1031 = vsub.f32 1.0, %v1030
    %v1032 = vmul.f32 %v1029, %v1031
    %v1033 = vadd.f32 %v1029, %v1032
    %vm1034 = vweird.f32 %v1028
    %vm1035 = vweird.f32 %v1029
    %vm1036 = vmor %vm1034, %vm1035
    %v1037 = vsel %vm1036, %v1029, %v1033
    %v1038 = vand.u32 2147483647, %v1028
    %vm1039 = vcmp.eq.f32.partialorder %v1038, 8.507059e+37
    %v1040 = vand.u32 %v1028, 2147483648
    %v1041 = vor.u32 1.1754944e-38, %v1040
    %v1042 = vsel %vm1039, %v1041, %v1037
    %v1043 = vmul.f32 1.0, %v1042
    %v1044 = vmul.f32 %v1023, %v894
    %v1045 = vmul.f32 %v1004, %v1024
    %v1046 = vadd.f32 %v1044, %v1045
    %v1047 = vtanh.pop %v1046
    %v1048 = vmul.f32 %v1043, %v1047
    %s1049 = scalar_lea.vmem [#allocation2], 128
    %v1050 = vld [vmem:[%s1049] sm:$0xff]
    %v1051 = vld [vmem:[%s1049 + $0x8] sm:$0xff]
    %v1052 = vld [vmem:[%s1049 + $0x10] sm:$0xff]
    %v1053 = vld [vmem:[%s1049 + $0x18] sm:$0xff]
    %1054 = vmatpush.msra.mxu0 %v442
    %1055 = vmatpush.msra.mxu0 %v438
    %1056 = vmatpush.msra.mxu0 %v434
    %1057 = vmatpush.msra.mxu0 %v430
    %1058 = vmatpush.msra.mxu0 %v426
    %1059 = vmatpush.msra.mxu0 %v422
    %1060 = vmatpush.msra.mxu0 %v418
    %1061 = vmatpush.msra.mxu0 %v414
    %1062 = vmatpush.msra.mxu0 %v410
    %1063 = vmatpush.msra.mxu0 %v406
    %1064 = vmatpush.msra.mxu0 %v402
    %1065 = vmatpush.msra.mxu0 %v398
    %1066 = vmatpush.msra.mxu0 %v394
    %1067 = vmatpush.msra.mxu0 %v390
    %1068 = vmatpush.msra.mxu0 %v386
    %1069 = vmatpush.msra.mxu0 %v382
    %1070 = vmatmul.f32.gmra.mxu0 %v1048
    %v1071 = vpop.f32.mrf.mxu0
    %v1072 = vadd.f32 0.0, %v1071
    %1073 = vdwg.mxu0
    %1074 = vmatpush.msra.mxu0 %v443
    %1075 = vmatpush.msra.mxu0 %v439
    %1076 = vmatpush.msra.mxu0 %v435
    %1077 = vmatpush.msra.mxu0 %v431
    %1078 = vmatpush.msra.mxu0 %v427
    %1079 = vmatpush.msra.mxu0 %v423
    %1080 = vmatpush.msra.mxu0 %v419
    %1081 = vmatpush.msra.mxu0 %v415
    %1082 = vmatpush.msra.mxu0 %v411
    %1083 = vmatpush.msra.mxu0 %v407
    %1084 = vmatpush.msra.mxu0 %v403
    %1085 = vmatpush.msra.mxu0 %v399
    %1086 = vmatpush.msra.mxu0 %v395
    %1087 = vmatpush.msra.mxu0 %v391
    %1088 = vmatpush.msra.mxu0 %v387
    %1089 = vmatpush.msra.mxu0 %v383
    %1090 = vmatmul.f32.gmra.mxu0 %v1048
    %v1091 = vpop.f32.mrf.mxu0
    %v1092 = vadd.f32 0.0, %v1091
    %1093 = vdwg.mxu0
    %1094 = vmatpush.msra.mxu0 %v444
    %1095 = vmatpush.msra.mxu0 %v440
    %1096 = vmatpush.msra.mxu0 %v436
    %1097 = vmatpush.msra.mxu0 %v432
    %1098 = vmatpush.msra.mxu0 %v428
    %1099 = vmatpush.msra.mxu0 %v424
    %1100 = vmatpush.msra.mxu0 %v420
    %1101 = vmatpush.msra.mxu0 %v416
    %1102 = vmatpush.msra.mxu0 %v412
    %1103 = vmatpush.msra.mxu0 %v408
    %1104 = vmatpush.msra.mxu0 %v404
    %1105 = vmatpush.msra.mxu0 %v400
    %1106 = vmatpush.msra.mxu0 %v396
    %1107 = vmatpush.msra.mxu0 %v392
    %1108 = vmatpush.msra.mxu0 %v388
    %1109 = vmatpush.msra.mxu0 %v384
    %1110 = vmatmul.f32.gmra.mxu0 %v1048
    %v1111 = vpop.f32.mrf.mxu0
    %v1112 = vadd.f32 0.0, %v1111
    %1113 = vdwg.mxu0
    %1114 = vmatpush.msra.mxu0 %v445
    %1115 = vmatpush.msra.mxu0 %v441
    %1116 = vmatpush.msra.mxu0 %v437
    %1117 = vmatpush.msra.mxu0 %v433
    %1118 = vmatpush.msra.mxu0 %v429
    %1119 = vmatpush.msra.mxu0 %v425
    %1120 = vmatpush.msra.mxu0 %v421
    %1121 = vmatpush.msra.mxu0 %v417
    %1122 = vmatpush.msra.mxu0 %v413
    %1123 = vmatpush.msra.mxu0 %v409
    %1124 = vmatpush.msra.mxu0 %v405
    %1125 = vmatpush.msra.mxu0 %v401
    %1126 = vmatpush.msra.mxu0 %v397
    %1127 = vmatpush.msra.mxu0 %v393
    %1128 = vmatpush.msra.mxu0 %v389
    %1129 = vmatpush.msra.mxu0 %v385
    %1130 = vmatmul.f32.gmra.mxu0 %v1048
    %v1131 = vpop.f32.mrf.mxu0
    %v1132 = vadd.f32 0.0, %v1131
    %1133 = vdwg.mxu0
    %v1134 = vadd.f32 %v1050, %v1072
    %v1135 = vadd.f32 %v1051, %v1092
    %v1136 = vadd.f32 %v1052, %v1112
    %v1137 = vadd.f32 %v1053, %v1132
    %v1138 = vxor.u32 %v1134, 2147483648
    %v1139 = vmul.f32 %v1138, 1.442695
    %v1140 = vpow.pop %v1139
    %v1141 = vadd.f32 %v1140, 1.0
    %v1142 = vrcp.pop %v1141
    %v1143 = vmul.f32 %v1141, %v1142
    %v1144 = vsub.f32 1.0, %v1143
    %v1145 = vmul.f32 %v1142, %v1144
    %v1146 = vadd.f32 %v1142, %v1145
    %vm1147 = vweird.f32 %v1141
    %vm1148 = vweird.f32 %v1142
    %vm1149 = vmor %vm1147, %vm1148
    %v1150 = vsel %vm1149, %v1142, %v1146
    %v1151 = vand.u32 2147483647, %v1141
    %vm1152 = vcmp.eq.f32.partialorder %v1151, 8.507059e+37
    %v1153 = vand.u32 %v1141, 2147483648
    %v1154 = vor.u32 1.1754944e-38, %v1153
    %v1155 = vsel %vm1152, %v1154, %v1150
    %v1156 = vmul.f32 1.0, %v1155
    %v1157 = vxor.u32 %v1135, 2147483648
    %v1158 = vmul.f32 %v1157, 1.442695
    %v1159 = vpow.pop %v1158
    %v1160 = vadd.f32 %v1159, 1.0
    %v1161 = vrcp.pop %v1160
    %v1162 = vmul.f32 %v1160, %v1161
    %v1163 = vsub.f32 1.0, %v1162
    %v1164 = vmul.f32 %v1161, %v1163
    %v1165 = vadd.f32 %v1161, %v1164
    %vm1166 = vweird.f32 %v1160
    %vm1167 = vweird.f32 %v1161
    %vm1168 = vmor %vm1166, %vm1167
    %v1169 = vsel %vm1168, %v1161, %v1165
    %v1170 = vand.u32 2147483647, %v1160
    %vm1171 = vcmp.eq.f32.partialorder %v1170, 8.507059e+37
    %v1172 = vand.u32 %v1160, 2147483648
    %v1173 = vor.u32 1.1754944e-38, %v1172
    %v1174 = vsel %vm1171, %v1173, %v1169
    %v1175 = vmul.f32 1.0, %v1174
    %v1176 = vtanh.pop %v1136
    %v1177 = vxor.u32 %v1137, 2147483648
    %v1178 = vmul.f32 %v1177, 1.442695
    %v1179 = vpow.pop %v1178
    %v1180 = vadd.f32 %v1179, 1.0
    %v1181 = vrcp.pop %v1180
    %v1182 = vmul.f32 %v1180, %v1181
    %v1183 = vsub.f32 1.0, %v1182
    %v1184 = vmul.f32 %v1181, %v1183
    %v1185 = vadd.f32 %v1181, %v1184
    %vm1186 = vweird.f32 %v1180
    %vm1187 = vweird.f32 %v1181
    %vm1188 = vmor %vm1186, %vm1187
    %v1189 = vsel %vm1188, %v1181, %v1185
    %v1190 = vand.u32 2147483647, %v1180
    %vm1191 = vcmp.eq.f32.partialorder %v1190, 8.507059e+37
    %v1192 = vand.u32 %v1180, 2147483648
    %v1193 = vor.u32 1.1754944e-38, %v1192
    %v1194 = vsel %vm1191, %v1193, %v1189
    %v1195 = vmul.f32 1.0, %v1194
    %v1196 = vmul.f32 %v1175, %v1046
    %v1197 = vmul.f32 %v1156, %v1176
    %v1198 = vadd.f32 %v1196, %v1197
    %v1199 = vtanh.pop %v1198
    %v1200 = vmul.f32 %v1195, %v1199
    %s1201 = scalar_lea.vmem [#allocation2], 160
    %v1202 = vld [vmem:[%s1201] sm:$0xff]
    %v1203 = vld [vmem:[%s1201 + $0x8] sm:$0xff]
    %v1204 = vld [vmem:[%s1201 + $0x10] sm:$0xff]
    %v1205 = vld [vmem:[%s1201 + $0x18] sm:$0xff]
    %1206 = vmatpush.msra.mxu0 %v442
    %1207 = vmatpush.msra.mxu0 %v438
    %1208 = vmatpush.msra.mxu0 %v434
    %1209 = vmatpush.msra.mxu0 %v430
    %1210 = vmatpush.msra.mxu0 %v426
    %1211 = vmatpush.msra.mxu0 %v422
    %1212 = vmatpush.msra.mxu0 %v418
    %1213 = vmatpush.msra.mxu0 %v414
    %1214 = vmatpush.msra.mxu0 %v410
    %1215 = vmatpush.msra.mxu0 %v406
    %1216 = vmatpush.msra.mxu0 %v402
    %1217 = vmatpush.msra.mxu0 %v398
    %1218 = vmatpush.msra.mxu0 %v394
    %1219 = vmatpush.msra.mxu0 %v390
    %1220 = vmatpush.msra.mxu0 %v386
    %1221 = vmatpush.msra.mxu0 %v382
    %1222 = vmatmul.f32.gmra.mxu0 %v1200
    %v1223 = vpop.f32.mrf.mxu0
    %v1224 = vadd.f32 0.0, %v1223
    %1225 = vdwg.mxu0
    %1226 = vmatpush.msra.mxu0 %v443
    %1227 = vmatpush.msra.mxu0 %v439
    %1228 = vmatpush.msra.mxu0 %v435
    %1229 = vmatpush.msra.mxu0 %v431
    %1230 = vmatpush.msra.mxu0 %v427
    %1231 = vmatpush.msra.mxu0 %v423
    %1232 = vmatpush.msra.mxu0 %v419
    %1233 = vmatpush.msra.mxu0 %v415
    %1234 = vmatpush.msra.mxu0 %v411
    %1235 = vmatpush.msra.mxu0 %v407
    %1236 = vmatpush.msra.mxu0 %v403
    %1237 = vmatpush.msra.mxu0 %v399
    %1238 = vmatpush.msra.mxu0 %v395
    %1239 = vmatpush.msra.mxu0 %v391
    %1240 = vmatpush.msra.mxu0 %v387
    %1241 = vmatpush.msra.mxu0 %v383
    %1242 = vmatmul.f32.gmra.mxu0 %v1200
    %v1243 = vpop.f32.mrf.mxu0
    %v1244 = vadd.f32 0.0, %v1243
    %1245 = vdwg.mxu0
    %1246 = vmatpush.msra.mxu0 %v444
    %1247 = vmatpush.msra.mxu0 %v440
    %1248 = vmatpush.msra.mxu0 %v436
    %1249 = vmatpush.msra.mxu0 %v432
    %1250 = vmatpush.msra.mxu0 %v428
    %1251 = vmatpush.msra.mxu0 %v424
    %1252 = vmatpush.msra.mxu0 %v420
    %1253 = vmatpush.msra.mxu0 %v416
    %1254 = vmatpush.msra.mxu0 %v412
    %1255 = vmatpush.msra.mxu0 %v408
    %1256 = vmatpush.msra.mxu0 %v404
    %1257 = vmatpush.msra.mxu0 %v400
    %1258 = vmatpush.msra.mxu0 %v396
    %1259 = vmatpush.msra.mxu0 %v392
    %1260 = vmatpush.msra.mxu0 %v388
    %1261 = vmatpush.msra.mxu0 %v384
    %1262 = vmatmul.f32.gmra.mxu0 %v1200
    %v1263 = vpop.f32.mrf.mxu0
    %v1264 = vadd.f32 0.0, %v1263
    %1265 = vdwg.mxu0
    %1266 = vmatpush.msra.mxu0 %v445
    %1267 = vmatpush.msra.mxu0 %v441
    %1268 = vmatpush.msra.mxu0 %v437
    %1269 = vmatpush.msra.mxu0 %v433
    %1270 = vmatpush.msra.mxu0 %v429
    %1271 = vmatpush.msra.mxu0 %v425
    %1272 = vmatpush.msra.mxu0 %v421
    %1273 = vmatpush.msra.mxu0 %v417
    %1274 = vmatpush.msra.mxu0 %v413
    %1275 = vmatpush.msra.mxu0 %v409
    %1276 = vmatpush.msra.mxu0 %v405
    %1277 = vmatpush.msra.mxu0 %v401
    %1278 = vmatpush.msra.mxu0 %v397
    %1279 = vmatpush.msra.mxu0 %v393
    %1280 = vmatpush.msra.mxu0 %v389
    %1281 = vmatpush.msra.mxu0 %v385
    %1282 = vmatmul.f32.gmra.mxu0 %v1200
    %v1283 = vpop.f32.mrf.mxu0
    %v1284 = vadd.f32 0.0, %v1283
    %1285 = vdwg.mxu0
    %v1286 = vadd.f32 %v1202, %v1224
    %v1287 = vadd.f32 %v1203, %v1244
    %v1288 = vadd.f32 %v1204, %v1264
    %v1289 = vadd.f32 %v1205, %v1284
    %v1290 = vxor.u32 %v1286, 2147483648
    %v1291 = vmul.f32 %v1290, 1.442695
    %v1292 = vpow.pop %v1291
    %v1293 = vadd.f32 %v1292, 1.0
    %v1294 = vrcp.pop %v1293
    %v1295 = vmul.f32 %v1293, %v1294
    %v1296 = vsub.f32 1.0, %v1295
    %v1297 = vmul.f32 %v1294, %v1296
    %v1298 = vadd.f32 %v1294, %v1297
    %vm1299 = vweird.f32 %v1293
    %vm1300 = vweird.f32 %v1294
    %vm1301 = vmor %vm1299, %vm1300
    %v1302 = vsel %vm1301, %v1294, %v1298
    %v1303 = vand.u32 2147483647, %v1293
    %vm1304 = vcmp.eq.f32.partialorder %v1303, 8.507059e+37
    %v1305 = vand.u32 %v1293, 2147483648
    %v1306 = vor.u32 1.1754944e-38, %v1305
    %v1307 = vsel %vm1304, %v1306, %v1302
    %v1308 = vmul.f32 1.0, %v1307
    %v1309 = vxor.u32 %v1287, 2147483648
    %v1310 = vmul.f32 %v1309, 1.442695
    %v1311 = vpow.pop %v1310
    %v1312 = vadd.f32 %v1311, 1.0
    %v1313 = vrcp.pop %v1312
    %v1314 = vmul.f32 %v1312, %v1313
    %v1315 = vsub.f32 1.0, %v1314
    %v1316 = vmul.f32 %v1313, %v1315
    %v1317 = vadd.f32 %v1313, %v1316
    %vm1318 = vweird.f32 %v1312
    %vm1319 = vweird.f32 %v1313
    %vm1320 = vmor %vm1318, %vm1319
    %v1321 = vsel %vm1320, %v1313, %v1317
    %v1322 = vand.u32 2147483647, %v1312
    %vm1323 = vcmp.eq.f32.partialorder %v1322, 8.507059e+37
    %v1324 = vand.u32 %v1312, 2147483648
    %v1325 = vor.u32 1.1754944e-38, %v1324
    %v1326 = vsel %vm1323, %v1325, %v1321
    %v1327 = vmul.f32 1.0, %v1326
    %v1328 = vtanh.pop %v1288
    %v1329 = vxor.u32 %v1289, 2147483648
    %v1330 = vmul.f32 %v1329, 1.442695
    %v1331 = vpow.pop %v1330
    %v1332 = vadd.f32 %v1331, 1.0
    %v1333 = vrcp.pop %v1332
    %v1334 = vmul.f32 %v1332, %v1333
    %v1335 = vsub.f32 1.0, %v1334
    %v1336 = vmul.f32 %v1333, %v1335
    %v1337 = vadd.f32 %v1333, %v1336
    %vm1338 = vweird.f32 %v1332
    %vm1339 = vweird.f32 %v1333
    %vm1340 = vmor %vm1338, %vm1339
    %v1341 = vsel %vm1340, %v1333, %v1337
    %v1342 = vand.u32 2147483647, %v1332
    %vm1343 = vcmp.eq.f32.partialorder %v1342, 8.507059e+37
    %v1344 = vand.u32 %v1332, 2147483648
    %v1345 = vor.u32 1.1754944e-38, %v1344
    %v1346 = vsel %vm1343, %v1345, %v1341
    %v1347 = vmul.f32 1.0, %v1346
    %v1348 = vmul.f32 %v1327, %v1198
    %v1349 = vmul.f32 %v1308, %v1328
    %v1350 = vadd.f32 %v1348, %v1349
    %v1351 = vtanh.pop %v1350
    %v1352 = vmul.f32 %v1347, %v1351
    %s1353 = scalar_lea.vmem [#allocation2], 192
    %v1354 = vld [vmem:[%s1353] sm:$0xff]
    %v1355 = vld [vmem:[%s1353 + $0x8] sm:$0xff]
    %v1356 = vld [vmem:[%s1353 + $0x10] sm:$0xff]
    %v1357 = vld [vmem:[%s1353 + $0x18] sm:$0xff]
    %1358 = vmatpush.msra.mxu0 %v442
    %1359 = vmatpush.msra.mxu0 %v438
    %1360 = vmatpush.msra.mxu0 %v434
    %1361 = vmatpush.msra.mxu0 %v430
    %1362 = vmatpush.msra.mxu0 %v426
    %1363 = vmatpush.msra.mxu0 %v422
    %1364 = vmatpush.msra.mxu0 %v418
    %1365 = vmatpush.msra.mxu0 %v414
    %1366 = vmatpush.msra.mxu0 %v410
    %1367 = vmatpush.msra.mxu0 %v406
    %1368 = vmatpush.msra.mxu0 %v402
    %1369 = vmatpush.msra.mxu0 %v398
    %1370 = vmatpush.msra.mxu0 %v394
    %1371 = vmatpush.msra.mxu0 %v390
    %1372 = vmatpush.msra.mxu0 %v386
    %1373 = vmatpush.msra.mxu0 %v382
    %1374 = vmatmul.f32.gmra.mxu0 %v1352
    %v1375 = vpop.f32.mrf.mxu0
    %v1376 = vadd.f32 0.0, %v1375
    %1377 = vdwg.mxu0
    %1378 = vmatpush.msra.mxu0 %v443
    %1379 = vmatpush.msra.mxu0 %v439
    %1380 = vmatpush.msra.mxu0 %v435
    %1381 = vmatpush.msra.mxu0 %v431
    %1382 = vmatpush.msra.mxu0 %v427
    %1383 = vmatpush.msra.mxu0 %v423
    %1384 = vmatpush.msra.mxu0 %v419
    %1385 = vmatpush.msra.mxu0 %v415
    %1386 = vmatpush.msra.mxu0 %v411
    %1387 = vmatpush.msra.mxu0 %v407
    %1388 = vmatpush.msra.mxu0 %v403
    %1389 = vmatpush.msra.mxu0 %v399
    %1390 = vmatpush.msra.mxu0 %v395
    %1391 = vmatpush.msra.mxu0 %v391
    %1392 = vmatpush.msra.mxu0 %v387
    %1393 = vmatpush.msra.mxu0 %v383
    %1394 = vmatmul.f32.gmra.mxu0 %v1352
    %v1395 = vpop.f32.mrf.mxu0
    %v1396 = vadd.f32 0.0, %v1395
    %1397 = vdwg.mxu0
    %1398 = vmatpush.msra.mxu0 %v444
    %1399 = vmatpush.msra.mxu0 %v440
    %1400 = vmatpush.msra.mxu0 %v436
    %1401 = vmatpush.msra.mxu0 %v432
    %1402 = vmatpush.msra.mxu0 %v428
    %1403 = vmatpush.msra.mxu0 %v424
    %1404 = vmatpush.msra.mxu0 %v420
    %1405 = vmatpush.msra.mxu0 %v416
    %1406 = vmatpush.msra.mxu0 %v412
    %1407 = vmatpush.msra.mxu0 %v408
    %1408 = vmatpush.msra.mxu0 %v404
    %1409 = vmatpush.msra.mxu0 %v400
    %1410 = vmatpush.msra.mxu0 %v396
    %1411 = vmatpush.msra.mxu0 %v392
    %1412 = vmatpush.msra.mxu0 %v388
    %1413 = vmatpush.msra.mxu0 %v384
    %1414 = vmatmul.f32.gmra.mxu0 %v1352
    %v1415 = vpop.f32.mrf.mxu0
    %v1416 = vadd.f32 0.0, %v1415
    %1417 = vdwg.mxu0
    %1418 = vmatpush.msra.mxu0 %v445
    %1419 = vmatpush.msra.mxu0 %v441
    %1420 = vmatpush.msra.mxu0 %v437
    %1421 = vmatpush.msra.mxu0 %v433
    %1422 = vmatpush.msra.mxu0 %v429
    %1423 = vmatpush.msra.mxu0 %v425
    %1424 = vmatpush.msra.mxu0 %v421
    %1425 = vmatpush.msra.mxu0 %v417
    %1426 = vmatpush.msra.mxu0 %v413
    %1427 = vmatpush.msra.mxu0 %v409
    %1428 = vmatpush.msra.mxu0 %v405
    %1429 = vmatpush.msra.mxu0 %v401
    %1430 = vmatpush.msra.mxu0 %v397
    %1431 = vmatpush.msra.mxu0 %v393
    %1432 = vmatpush.msra.mxu0 %v389
    %1433 = vmatpush.msra.mxu0 %v385
    %1434 = vmatmul.f32.gmra.mxu0 %v1352
    %v1435 = vpop.f32.mrf.mxu0
    %v1436 = vadd.f32 0.0, %v1435
    %1437 = vdwg.mxu0
    %v1438 = vadd.f32 %v1354, %v1376
    %v1439 = vadd.f32 %v1355, %v1396
    %v1440 = vadd.f32 %v1356, %v1416
    %v1441 = vadd.f32 %v1357, %v1436
    %v1442 = vxor.u32 %v1438, 2147483648
    %v1443 = vmul.f32 %v1442, 1.442695
    %v1444 = vpow.pop %v1443
    %v1445 = vadd.f32 %v1444, 1.0
    %v1446 = vrcp.pop %v1445
    %v1447 = vmul.f32 %v1445, %v1446
    %v1448 = vsub.f32 1.0, %v1447
    %v1449 = vmul.f32 %v1446, %v1448
    %v1450 = vadd.f32 %v1446, %v1449
    %vm1451 = vweird.f32 %v1445
    %vm1452 = vweird.f32 %v1446
    %vm1453 = vmor %vm1451, %vm1452
    %v1454 = vsel %vm1453, %v1446, %v1450
    %v1455 = vand.u32 2147483647, %v1445
    %vm1456 = vcmp.eq.f32.partialorder %v1455, 8.507059e+37
    %v1457 = vand.u32 %v1445, 2147483648
    %v1458 = vor.u32 1.1754944e-38, %v1457
    %v1459 = vsel %vm1456, %v1458, %v1454
    %v1460 = vmul.f32 1.0, %v1459
    %v1461 = vxor.u32 %v1439, 2147483648
    %v1462 = vmul.f32 %v1461, 1.442695
    %v1463 = vpow.pop %v1462
    %v1464 = vadd.f32 %v1463, 1.0
    %v1465 = vrcp.pop %v1464
    %v1466 = vmul.f32 %v1464, %v1465
    %v1467 = vsub.f32 1.0, %v1466
    %v1468 = vmul.f32 %v1465, %v1467
    %v1469 = vadd.f32 %v1465, %v1468
    %vm1470 = vweird.f32 %v1464
    %vm1471 = vweird.f32 %v1465
    %vm1472 = vmor %vm1470, %vm1471
    %v1473 = vsel %vm1472, %v1465, %v1469
    %v1474 = vand.u32 2147483647, %v1464
    %vm1475 = vcmp.eq.f32.partialorder %v1474, 8.507059e+37
    %v1476 = vand.u32 %v1464, 2147483648
    %v1477 = vor.u32 1.1754944e-38, %v1476
    %v1478 = vsel %vm1475, %v1477, %v1473
    %v1479 = vmul.f32 1.0, %v1478
    %v1480 = vtanh.pop %v1440
    %v1481 = vxor.u32 %v1441, 2147483648
    %v1482 = vmul.f32 %v1481, 1.442695
    %v1483 = vpow.pop %v1482
    %v1484 = vadd.f32 %v1483, 1.0
    %v1485 = vrcp.pop %v1484
    %v1486 = vmul.f32 %v1484, %v1485
    %v1487 = vsub.f32 1.0, %v1486
    %v1488 = vmul.f32 %v1485, %v1487
    %v1489 = vadd.f32 %v1485, %v1488
    %vm1490 = vweird.f32 %v1484
    %vm1491 = vweird.f32 %v1485
    %vm1492 = vmor %vm1490, %vm1491
    %v1493 = vsel %vm1492, %v1485, %v1489
    %v1494 = vand.u32 2147483647, %v1484
    %vm1495 = vcmp.eq.f32.partialorder %v1494, 8.507059e+37
    %v1496 = vand.u32 %v1484, 2147483648
    %v1497 = vor.u32 1.1754944e-38, %v1496
    %v1498 = vsel %vm1495, %v1497, %v1493
    %v1499 = vmul.f32 1.0, %v1498
    %v1500 = vmul.f32 %v1479, %v1350
    %v1501 = vmul.f32 %v1460, %v1480
    %v1502 = vadd.f32 %v1500, %v1501
    %v1503 = vtanh.pop %v1502
    %v1504 = vmul.f32 %v1499, %v1503
    %s1505 = scalar_lea.vmem [#allocation2], 224
    %v1506 = vld [vmem:[%s1505] sm:$0xff]
    %v1507 = vld [vmem:[%s1505 + $0x8] sm:$0xff]
    %v1508 = vld [vmem:[%s1505 + $0x10] sm:$0xff]
    %v1509 = vld [vmem:[%s1505 + $0x18] sm:$0xff]
    %1510 = vmatpush.msra.mxu0 %v442
    %1511 = vmatpush.msra.mxu0 %v438
    %1512 = vmatpush.msra.mxu0 %v434
    %1513 = vmatpush.msra.mxu0 %v430
    %1514 = vmatpush.msra.mxu0 %v426
    %1515 = vmatpush.msra.mxu0 %v422
    %1516 = vmatpush.msra.mxu0 %v418
    %1517 = vmatpush.msra.mxu0 %v414
    %1518 = vmatpush.msra.mxu0 %v410
    %1519 = vmatpush.msra.mxu0 %v406
    %1520 = vmatpush.msra.mxu0 %v402
    %1521 = vmatpush.msra.mxu0 %v398
    %1522 = vmatpush.msra.mxu0 %v394
    %1523 = vmatpush.msra.mxu0 %v390
    %1524 = vmatpush.msra.mxu0 %v386
    %1525 = vmatpush.msra.mxu0 %v382
    %1526 = vmatmul.f32.gmra.mxu0 %v1504
    %v1527 = vpop.f32.mrf.mxu0
    %v1528 = vadd.f32 0.0, %v1527
    %1529 = vdwg.mxu0
    %1530 = vmatpush.msra.mxu0 %v443
    %1531 = vmatpush.msra.mxu0 %v439
    %1532 = vmatpush.msra.mxu0 %v435
    %1533 = vmatpush.msra.mxu0 %v431
    %1534 = vmatpush.msra.mxu0 %v427
    %1535 = vmatpush.msra.mxu0 %v423
    %1536 = vmatpush.msra.mxu0 %v419
    %1537 = vmatpush.msra.mxu0 %v415
    %1538 = vmatpush.msra.mxu0 %v411
    %1539 = vmatpush.msra.mxu0 %v407
    %1540 = vmatpush.msra.mxu0 %v403
    %1541 = vmatpush.msra.mxu0 %v399
    %1542 = vmatpush.msra.mxu0 %v395
    %1543 = vmatpush.msra.mxu0 %v391
    %1544 = vmatpush.msra.mxu0 %v387
    %1545 = vmatpush.msra.mxu0 %v383
    %1546 = vmatmul.f32.gmra.mxu0 %v1504
    %v1547 = vpop.f32.mrf.mxu0
    %v1548 = vadd.f32 0.0, %v1547
    %1549 = vdwg.mxu0
    %1550 = vmatpush.msra.mxu0 %v444
    %1551 = vmatpush.msra.mxu0 %v440
    %1552 = vmatpush.msra.mxu0 %v436
    %1553 = vmatpush.msra.mxu0 %v432
    %1554 = vmatpush.msra.mxu0 %v428
    %1555 = vmatpush.msra.mxu0 %v424
    %1556 = vmatpush.msra.mxu0 %v420
    %1557 = vmatpush.msra.mxu0 %v416
    %1558 = vmatpush.msra.mxu0 %v412
    %1559 = vmatpush.msra.mxu0 %v408
    %1560 = vmatpush.msra.mxu0 %v404
    %1561 = vmatpush.msra.mxu0 %v400
    %1562 = vmatpush.msra.mxu0 %v396
    %1563 = vmatpush.msra.mxu0 %v392
    %1564 = vmatpush.msra.mxu0 %v388
    %1565 = vmatpush.msra.mxu0 %v384
    %1566 = vmatmul.f32.gmra.mxu0 %v1504
    %v1567 = vpop.f32.mrf.mxu0
    %v1568 = vadd.f32 0.0, %v1567
    %1569 = vdwg.mxu0
    %1570 = vmatpush.msra.mxu0 %v445
    %1571 = vmatpush.msra.mxu0 %v441
    %1572 = vmatpush.msra.mxu0 %v437
    %1573 = vmatpush.msra.mxu0 %v433
    %1574 = vmatpush.msra.mxu0 %v429
    %1575 = vmatpush.msra.mxu0 %v425
    %1576 = vmatpush.msra.mxu0 %v421
    %1577 = vmatpush.msra.mxu0 %v417
    %1578 = vmatpush.msra.mxu0 %v413
    %1579 = vmatpush.msra.mxu0 %v409
    %1580 = vmatpush.msra.mxu0 %v405
    %1581 = vmatpush.msra.mxu0 %v401
    %1582 = vmatpush.msra.mxu0 %v397
    %1583 = vmatpush.msra.mxu0 %v393
    %1584 = vmatpush.msra.mxu0 %v389
    %1585 = vmatpush.msra.mxu0 %v385
    %1586 = vmatmul.f32.gmra.mxu0 %v1504
    %v1587 = vpop.f32.mrf.mxu0
    %v1588 = vadd.f32 0.0, %v1587
    %1589 = vdwg.mxu0
    %v1590 = vadd.f32 %v1506, %v1528
    %v1591 = vadd.f32 %v1507, %v1548
    %v1592 = vadd.f32 %v1508, %v1568
    %v1593 = vadd.f32 %v1509, %v1588
    %v1594 = vxor.u32 %v1590, 2147483648
    %v1595 = vmul.f32 %v1594, 1.442695
    %v1596 = vpow.pop %v1595
    %v1597 = vadd.f32 %v1596, 1.0
    %v1598 = vrcp.pop %v1597
    %v1599 = vmul.f32 %v1597, %v1598
    %v1600 = vsub.f32 1.0, %v1599
    %v1601 = vmul.f32 %v1598, %v1600
    %v1602 = vadd.f32 %v1598, %v1601
    %vm1603 = vweird.f32 %v1597
    %vm1604 = vweird.f32 %v1598
    %vm1605 = vmor %vm1603, %vm1604
    %v1606 = vsel %vm1605, %v1598, %v1602
    %v1607 = vand.u32 2147483647, %v1597
    %vm1608 = vcmp.eq.f32.partialorder %v1607, 8.507059e+37
    %v1609 = vand.u32 %v1597, 2147483648
    %v1610 = vor.u32 1.1754944e-38, %v1609
    %v1611 = vsel %vm1608, %v1610, %v1606
    %v1612 = vmul.f32 1.0, %v1611
    %v1613 = vxor.u32 %v1591, 2147483648
    %v1614 = vmul.f32 %v1613, 1.442695
    %v1615 = vpow.pop %v1614
    %v1616 = vadd.f32 %v1615, 1.0
    %v1617 = vrcp.pop %v1616
    %v1618 = vmul.f32 %v1616, %v1617
    %v1619 = vsub.f32 1.0, %v1618
    %v1620 = vmul.f32 %v1617, %v1619
    %v1621 = vadd.f32 %v1617, %v1620
    %vm1622 = vweird.f32 %v1616
    %vm1623 = vweird.f32 %v1617
    %vm1624 = vmor %vm1622, %vm1623
    %v1625 = vsel %vm1624, %v1617, %v1621
    %v1626 = vand.u32 2147483647, %v1616
    %vm1627 = vcmp.eq.f32.partialorder %v1626, 8.507059e+37
    %v1628 = vand.u32 %v1616, 2147483648
    %v1629 = vor.u32 1.1754944e-38, %v1628
    %v1630 = vsel %vm1627, %v1629, %v1625
    %v1631 = vmul.f32 1.0, %v1630
    %v1632 = vtanh.pop %v1592
    %v1633 = vxor.u32 %v1593, 2147483648
    %v1634 = vmul.f32 %v1633, 1.442695
    %v1635 = vpow.pop %v1634
    %v1636 = vadd.f32 %v1635, 1.0
    %v1637 = vrcp.pop %v1636
    %v1638 = vmul.f32 %v1636, %v1637
    %v1639 = vsub.f32 1.0, %v1638
    %v1640 = vmul.f32 %v1637, %v1639
    %v1641 = vadd.f32 %v1637, %v1640
    %vm1642 = vweird.f32 %v1636
    %vm1643 = vweird.f32 %v1637
    %vm1644 = vmor %vm1642, %vm1643
    %v1645 = vsel %vm1644, %v1637, %v1641
    %v1646 = vand.u32 2147483647, %v1636
    %vm1647 = vcmp.eq.f32.partialorder %v1646, 8.507059e+37
    %v1648 = vand.u32 %v1636, 2147483648
    %v1649 = vor.u32 1.1754944e-38, %v1648
    %v1650 = vsel %vm1647, %v1649, %v1645
    %v1651 = vmul.f32 1.0, %v1650
    %v1652 = vmul.f32 %v1631, %v1502
    %v1653 = vmul.f32 %v1612, %v1632
    %v1654 = vadd.f32 %v1652, %v1653
    %v1655 = vtanh.pop %v1654
    %v1656 = vmul.f32 %v1651, %v1655
    %v1657 = vld [vmem:[#allocation11] sm:$0xff]
    %v1658 = vld [vmem:[#allocation11 + $0x8] sm:$0xff]
    %v1659 = vld [vmem:[#allocation11 + $0x10] sm:$0xff]
    %v1660 = vld [vmem:[#allocation11 + $0x18] sm:$0xff]
    %v1661 = vld [vmem:[#allocation11 + $0x20] sm:$0xff]
    %v1662 = vld [vmem:[#allocation11 + $0x28] sm:$0xff]
    %v1663 = vld [vmem:[#allocation11 + $0x30] sm:$0xff]
    %v1664 = vld [vmem:[#allocation11 + $0x38] sm:$0xff]
    %v1665 = vld [vmem:[#allocation11 + $0x40] sm:$0xff]
    %v1666 = vld [vmem:[#allocation11 + $0x48] sm:$0xff]
    %v1667 = vld [vmem:[#allocation11 + $0x50] sm:$0xff]
    %v1668 = vld [vmem:[#allocation11 + $0x58] sm:$0xff]
    %v1669 = vld [vmem:[#allocation11 + $0x60] sm:$0xff]
    %v1670 = vld [vmem:[#allocation11 + $0x68] sm:$0xff]
    %v1671 = vld [vmem:[#allocation11 + $0x70] sm:$0xff]
    %v1672 = vld [vmem:[#allocation11 + $0x78] sm:$0xff]
    %v1673 = vld [vmem:[%s5] sm:$0x1]
    %v1675 = vperm.slane %v1673, 0
    %1677 = vmatpush.msra.mxu0 %v1672
    %1678 = vmatpush.msra.mxu0 %v1671
    %1679 = vmatpush.msra.mxu0 %v1670
    %1680 = vmatpush.msra.mxu0 %v1669
    %1681 = vmatpush.msra.mxu0 %v1668
    %1682 = vmatpush.msra.mxu0 %v1667
    %1683 = vmatpush.msra.mxu0 %v1666
    %1684 = vmatpush.msra.mxu0 %v1665
    %1685 = vmatpush.msra.mxu0 %v1664
    %1686 = vmatpush.msra.mxu0 %v1663
    %1687 = vmatpush.msra.mxu0 %v1662
    %1688 = vmatpush.msra.mxu0 %v1661
    %1689 = vmatpush.msra.mxu0 %v1660
    %1690 = vmatpush.msra.mxu0 %v1659
    %1691 = vmatpush.msra.mxu0 %v1658
    %1692 = vmatpush.msra.mxu0 %v1657
    %1693 = vmatmul.f32.gmra.mxu0 %v1656
    %v1694 = vpop.f32.mrf.mxu0
    %v1695 = vadd.f32 %v1675, %v1694
    %1696 = vdwg.mxu0
    %1697 = vst [vmem:[#allocation12] sm:$0xff] %v1695
    // Predicated region
    $region46: #{tpu_custom_call.1} parent=1 // pred_check
      _
    $region47: #{tpu_custom_call.1} parent=1 // pred_check_branch
      %1699 = sbr.rel (0) target = $region49
    $region48: #{tpu_custom_call.1} parent=1 // pred_region
      %1701 = vsyncadd [#allocation5], 0
      %s1703 = sshll.u32 [#allocation12], 4
      %s1704 = int_to_ptr.vmem [resolvable:$true] %s1703
      %s1705 = sshll.u32 %s6, 4
      %s1706 = int_to_ptr.hbm [resolvable:$true] %s1705
      %1708 = dma.vmem_to_hbm [thread:$0]  %s1704, 128, %s1706, [#allocation5]
    $region49: #{tpu_custom_call.1} parent=1 // pred_fallthru
      _
    // Predicated region
    $region50: #{tpu_custom_call.1} parent=1 // pred_check
      _
    $region51: #{tpu_custom_call.1} parent=1 // pred_check_branch
      %1710 = sbr.rel (0) target = $region53
    $region52: #{tpu_custom_call.1} parent=1 // pred_region
      %1712 = dma.done [#allocation5], 128
    $region53: #{tpu_custom_call.1} parent=1 // pred_fallthru
      _
    %1713 = vsyncpa [#allocation4], 1
    %1714 = vsyncpa [#allocation7], 1
    %1715 = vsyncpa [#allocation10], 1
    %1716 = vsyncpa [#allocation5], 1

</llo_original>
